<compile_context>
chip_gen: v7x
topology: tpu7x:2x2x1
jax: 0.10.0
libtpu: 0.0.40
codegen_flags: <defaults>
</compile_context>

<pallas_src>
import functools

import jax
import jax.numpy as jnp
from jax.experimental import pallas as pl
from jax.experimental.pallas import tpu as pltpu

_VMEM_LIMIT = 48 * 1024 * 1024      # stays inside v7x (64 MiB phys) and v5e budgets
_LN_EPS = 1e-5                      # torch.nn.LayerNorm default
_SQRT_2_OVER_PI = 0.7978845608028654


def _token_tile(m):
    """Rows per grid step: whole array when small, else 512 (multiple of 8)."""
    return m if m <= 1024 else 512


def _mosaic_params(n_parallel_axes):
    return pltpu.CompilerParams(
        dimension_semantics=("parallel",) * n_parallel_axes,
        vmem_limit_bytes=_VMEM_LIMIT)


def _gelu_tanh(x):
    return 0.5 * x * (1.0 + jnp.tanh(_SQRT_2_OVER_PI * (x + 0.044715 * x * x * x)))


# ---------------------------------------------------------------------------
# Kernel 1: fused LayerNorm + Linear (used for the QKV projection).
# ---------------------------------------------------------------------------
def _ln_matmul_kernel(x_ref, g_ref, b_ref, w_ref, bias_ref, o_ref, *, eps):
    x = x_ref[...].astype(jnp.float32)                         # (TM, D)
    mu = jnp.mean(x, axis=-1, keepdims=True)
    xc = x - mu
    var = jnp.mean(xc * xc, axis=-1, keepdims=True)
    xn = xc * jax.lax.rsqrt(var + eps)
    xn = xn * g_ref[...].astype(jnp.float32) + b_ref[...].astype(jnp.float32)
    y = jnp.dot(xn.astype(w_ref.dtype), w_ref[...],
                preferred_element_type=jnp.float32)             # (TM, Dout)
    y = y + bias_ref[...].astype(jnp.float32)
    o_ref[...] = y.astype(o_ref.dtype)


def ln_matmul(x, gamma, beta, w, bias, *, out_dtype, eps=_LN_EPS):
    m, d = x.shape
    d_out = w.shape[1]
    tm = _token_tile(m)
    cost = pl.CostEstimate(
        flops=int(2 * m * d * d_out + 8 * m * d),
        transcendentals=int(m),
        bytes_accessed=int(4 * (m * d + d * d_out + m * d_out)))
    return pl.pallas_call(
        functools.partial(_ln_matmul_kernel, eps=eps),
        out_shape=jax.ShapeDtypeStruct((m, d_out), out_dtype),
        grid_spec=pltpu.PrefetchScalarGridSpec(
            num_scalar_prefetch=0,
            grid=(pl.cdiv(m, tm),),
            in_specs=[
                pl.BlockSpec((tm, d), lambda i: (i, 0)),
                pl.BlockSpec((1, d), lambda i: (0, 0)),
                pl.BlockSpec((1, d), lambda i: (0, 0)),
                pl.BlockSpec((d, d_out), lambda i: (0, 0)),
                pl.BlockSpec((1, d_out), lambda i: (0, 0)),
            ],
            out_specs=pl.BlockSpec((tm, d_out), lambda i: (i, 0)),
        ),
        compiler_params=_mosaic_params(1),
        cost_estimate=cost,
    )(x, gamma.reshape(1, d), beta.reshape(1, d), w, bias.reshape(1, d_out))


# ---------------------------------------------------------------------------
# Kernel 2: per-(batch, head) scaled-dot-product attention with additive bias.
# ---------------------------------------------------------------------------
def _attention_kernel(q_ref, k_ref, v_ref, bias_ref, o_ref, *, scale):
    q = q_ref[0, 0]                                            # (N, Dh)
    k = k_ref[0, 0]
    v = v_ref[0, 0]
    dots = jax.lax.dot_general(                                # q @ k^T, no in-kernel transpose
        q, k, dimension_numbers=(((1,), (1,)), ((), ())),
        preferred_element_type=jnp.float32) * scale            # (N, N)
    dots = dots + bias_ref[0]
    mx = jnp.max(dots, axis=-1, keepdims=True)
    p = jnp.exp(dots - mx)
    attn = p * pl.reciprocal(jnp.sum(p, axis=-1, keepdims=True), approx=False)
    out = jnp.dot(attn.astype(v.dtype), v, preferred_element_type=jnp.float32)
    o_ref[0, 0] = out.astype(o_ref.dtype)


def attention(q, k, v, attn_bias, *, scale):
    b, h, n, dh = q.shape
    head_spec = pl.BlockSpec((1, 1, n, dh), lambda bi, hi: (bi, hi, 0, 0))
    return pl.pallas_call(
        functools.partial(_attention_kernel, scale=scale),
        out_shape=jax.ShapeDtypeStruct((b, h, n, dh), q.dtype),
        grid_spec=pltpu.PrefetchScalarGridSpec(
            num_scalar_prefetch=0,
            grid=(b, h),
            in_specs=[
                head_spec, head_spec, head_spec,
                pl.BlockSpec((1, n, n), lambda bi, hi: (bi, 0, 0)),
            ],
            out_specs=head_spec,
        ),
        compiler_params=_mosaic_params(2),
    )(q, k, v, attn_bias)


# ---------------------------------------------------------------------------
# Kernel 3: Linear + bias + residual add (attention output projection).
# ---------------------------------------------------------------------------
def _matmul_bias_res_kernel(x_ref, w_ref, b_ref, r_ref, o_ref):
    y = jnp.dot(x_ref[...], w_ref[...], preferred_element_type=jnp.float32)
    y = y + b_ref[...].astype(jnp.float32) + r_ref[...].astype(jnp.float32)
    o_ref[...] = y.astype(o_ref.dtype)


def matmul_bias_res(x, w, bias, res):
    m, d = x.shape
    d_out = w.shape[1]
    tm = _token_tile(m)
    cost = pl.CostEstimate(
        flops=int(2 * m * d * d_out + 2 * m * d_out),
        transcendentals=0,
        bytes_accessed=int(4 * (2 * m * d + d * d_out + m * d_out)))
    return pl.pallas_call(
        _matmul_bias_res_kernel,
        out_shape=jax.ShapeDtypeStruct((m, d_out), res.dtype),
        grid_spec=pltpu.PrefetchScalarGridSpec(
            num_scalar_prefetch=0,
            grid=(pl.cdiv(m, tm),),
            in_specs=[
                pl.BlockSpec((tm, d), lambda i: (i, 0)),
                pl.BlockSpec((d, d_out), lambda i: (0, 0)),
                pl.BlockSpec((1, d_out), lambda i: (0, 0)),
                pl.BlockSpec((tm, d_out), lambda i: (i, 0)),
            ],
            out_specs=pl.BlockSpec((tm, d_out), lambda i: (i, 0)),
        ),
        compiler_params=_mosaic_params(1),
        cost_estimate=cost,
    )(x, w, bias.reshape(1, d_out), res)


# ---------------------------------------------------------------------------
# Kernel 4: fused LayerNorm + Linear + GELU + Linear + bias + residual (FFN).
# ---------------------------------------------------------------------------
def _ln_ffn_res_kernel(x_ref, g_ref, b_ref, w1_ref, b1_ref, w2_ref, b2_ref,
                       o_ref, *, eps):
    x = x_ref[...].astype(jnp.float32)                         # (TM, D)
    mu = jnp.mean(x, axis=-1, keepdims=True)
    xc = x - mu
    var = jnp.mean(xc * xc, axis=-1, keepdims=True)
    xn = xc * jax.lax.rsqrt(var + eps)
    xn = xn * g_ref[...].astype(jnp.float32) + b_ref[...].astype(jnp.float32)
    h = jnp.dot(xn.astype(w1_ref.dtype), w1_ref[...],
                preferred_element_type=jnp.float32)            # (TM, Hd)
    h = _gelu_tanh(h + b1_ref[...].astype(jnp.float32))
    y = jnp.dot(h.astype(w2_ref.dtype), w2_ref[...],
                preferred_element_type=jnp.float32)            # (TM, D)
    y = y + b2_ref[...].astype(jnp.float32) + x                # residual add in f32
    o_ref[...] = y.astype(o_ref.dtype)


def ln_ffn_res(x, gamma, beta, w1, b1, w2, b2, *, eps=_LN_EPS):
    m, d = x.shape
    hd = w1.shape[1]
    tm = _token_tile(m)
    cost = pl.CostEstimate(
        flops=int(4 * m * d * hd + 8 * m * d + 12 * m * hd),
        transcendentals=int(m * hd + m),
        bytes_accessed=int(4 * (2 * m * d + 2 * d * hd)))
    return pl.pallas_call(
        functools.partial(_ln_ffn_res_kernel, eps=eps),
        out_shape=jax.ShapeDtypeStruct((m, d), x.dtype),
        grid_spec=pltpu.PrefetchScalarGridSpec(
            num_scalar_prefetch=0,
            grid=(pl.cdiv(m, tm),),
            in_specs=[
                pl.BlockSpec((tm, d), lambda i: (i, 0)),
                pl.BlockSpec((1, d), lambda i: (0, 0)),
                pl.BlockSpec((1, d), lambda i: (0, 0)),
                pl.BlockSpec((d, hd), lambda i: (0, 0)),
                pl.BlockSpec((1, hd), lambda i: (0, 0)),
                pl.BlockSpec((hd, d), lambda i: (0, 0)),
                pl.BlockSpec((1, d), lambda i: (0, 0)),
            ],
            out_specs=pl.BlockSpec((tm, d), lambda i: (i, 0)),
        ),
        compiler_params=_mosaic_params(1),
        cost_estimate=cost,
    )(x, gamma.reshape(1, d), beta.reshape(1, d), w1, b1.reshape(1, hd),
      w2, b2.reshape(1, d))


# ---------------------------------------------------------------------------
# Full Transformer forward (semantics of vit.py Transformer.forward, eval mode)
# ---------------------------------------------------------------------------
def transformer_forward(x, params, mask=None, *, heads,
                        compute_dtype=jnp.bfloat16, eps=_LN_EPS):
    b, n, d = x.shape
    dh = d // heads
    m = b * n
    scale = float(d) ** -0.5                   # NOTE: dim**-0.5 (full dim), as in the reference

    # mask -> additive attention bias (B, N, N), PyTorch apply_mask semantics
    if mask is None:
        attn_bias = jnp.zeros((b, n, n), jnp.float32)
    else:
        mk = mask.reshape(b, -1).astype(jnp.bool_)
        mk = jnp.concatenate([jnp.ones((b, 1), jnp.bool_), mk], axis=1)   # F.pad (1,0), value=True
        m2 = mk[:, None, :] & mk[:, :, None]
        attn_bias = jnp.where(m2, 0.0, -1e30).astype(jnp.float32)

    x_flat = x.reshape(m, d)
    for p in params:
        # --- Residual(PreNorm(MultiHeadAttention)) ---
        w_qkv_t = p["w_qkv"].T.astype(compute_dtype)           # (D, 3D), pre-transposed once
        qkv = ln_matmul(x_flat, p["ln1_g"], p["ln1_b"], w_qkv_t,
                        jnp.zeros((3 * d,), compute_dtype),
                        out_dtype=compute_dtype, eps=eps)       # (M, 3D)
        qkv = qkv.reshape(b, n, 3, heads, dh).transpose(2, 0, 3, 1, 4)
        q, k, v = qkv[0], qkv[1], qkv[2]                        # (B, H, N, Dh) each
        attn = attention(q, k, v, attn_bias, scale=scale)       # (B, H, N, Dh)
        attn = attn.transpose(0, 2, 1, 3).reshape(m, d)         # 'b h n d -> b n (h d)'
        w_o_t = p["w_o"].T.astype(compute_dtype)                # (D, D)
        x_flat = matmul_bias_res(attn, w_o_t, p["b_o"], x_flat)

        # --- Residual(PreNorm(FeedForward)) ---
        w1_t = p["w1"].T.astype(compute_dtype)                  # (D, mlp)
        w2_t = p["w2"].T.astype(compute_dtype)                  # (mlp, D)
        x_flat = ln_ffn_res(x_flat, p["ln2_g"], p["ln2_b"],
                            w1_t, p["b1"], w2_t, p["b2"], eps=eps)
    return x_flat.reshape(b, n, d)


# ---------------------------------------------------------------------------
# Parameter init (PyTorch layouts: Linear weight is (out_features, in_features))
# ---------------------------------------------------------------------------
def init_params(key, dim, depth, heads, mlp_dim):
    params = []
    for _ in range(depth):
        key, *ks = jax.random.split(key, 11)
        params.append(dict(
            ln1_g=1.0 + 0.1 * jax.random.normal(ks[0], (dim,), jnp.float32),
            ln1_b=0.1 * jax.random.normal(ks[1], (dim,), jnp.float32),
            w_qkv=0.1 * jax.random.normal(ks[2], (3 * dim, dim), jnp.float32),
            w_o=0.1 * jax.random.normal(ks[3], (dim, dim), jnp.float32),
            b_o=0.1 * jax.random.normal(ks[4], (dim,), jnp.float32),
            ln2_g=1.0 + 0.1 * jax.random.normal(ks[5], (dim,), jnp.float32),
            ln2_b=0.1 * jax.random.normal(ks[6], (dim,), jnp.float32),
            w1=0.1 * jax.random.normal(ks[7], (mlp_dim, dim), jnp.float32),
            b1=0.1 * jax.random.normal(ks[8], (mlp_dim,), jnp.float32),
            w2=0.1 * jax.random.normal(ks[9], (dim, mlp_dim), jnp.float32),
            b2=jnp.zeros((dim,), jnp.float32),
        ))
    return params


# ---------------------------------------------------------------------------
# Pure-JAX reference (same math, HIGHEST matmul precision)
# ---------------------------------------------------------------------------
def transformer_ref(x, params, mask=None, *, heads, eps=_LN_EPS):
    b, n, d = x.shape
    dh = d // heads
    scale = float(d) ** -0.5
    hp = jax.lax.Precision.HIGHEST
    if mask is None:
        bias = jnp.zeros((b, 1, n, n), jnp.float32)
    else:
        mk = mask.reshape(b, -1).astype(jnp.bool_)
        mk = jnp.concatenate([jnp.ones((b, 1), jnp.bool_), mk], axis=1)
        m2 = mk[:, None, :] & mk[:, :, None]
        bias = jnp.where(m2, 0.0, -1e30).astype(jnp.float32)[:, None, :, :]

    def ln(h, g, be):
        mu = jnp.mean(h, -1, keepdims=True)
        var = jnp.mean((h - mu) ** 2, -1, keepdims=True)
        return (h - mu) * jax.lax.rsqrt(var + eps) * g + be

    for p in params:
        h = ln(x, p["ln1_g"], p["ln1_b"])
        qkv = jnp.einsum("bnd,od->bno", h, p["w_qkv"], precision=hp)
        qkv = qkv.reshape(b, n, 3, heads, dh).transpose(2, 0, 3, 1, 4)
        q, k, v = qkv[0], qkv[1], qkv[2]
        dots = jnp.einsum("bhid,bhjd->bhij", q, k, precision=hp) * scale + bias
        attn = jax.nn.softmax(dots, axis=-1)
        o = jnp.einsum("bhij,bhjd->bhid", attn, v, precision=hp)
        o = o.transpose(0, 2, 1, 3).reshape(b, n, d)
        x = jnp.einsum("bnd,od->bno", o, p["w_o"], precision=hp) + p["b_o"] + x
        h = ln(x, p["ln2_g"], p["ln2_b"])
        h1 = _gelu_tanh(jnp.einsum("bnd,hd->bnh", h, p["w1"], precision=hp) + p["b1"])
        x = jnp.einsum("bnh,dh->bnd", h1, p["w2"], precision=hp) + p["b2"] + x
    return x


if __name__ == "__main__":
    # Small ViT-ish config: batch=2, tokens=8 (1 CLS + 7 patches), hidden=32,
    # heads=4, depth=2, mlp_dim=64.  (Real ViT dims are 128-multiples; the tiny
    # demo relies on block_shape == full array dims, which is always legal.)
    B, N, D, HEADS, DEPTH, MLP = 2, 8, 32, 4, 2, 64
    key = jax.random.PRNGKey(0)
    kx, kp = jax.random.split(key, 2)

    x = jax.random.normal(kx, (B, N, D), jnp.float32)
    params = init_params(kp, D, DEPTH, HEADS, MLP)
    mask = jnp.ones((B, N - 1), jnp.bool_)    # all-valid patch mask (CLS prepended internally)

    # f32 path: tight correctness check against the pure-JAX reference.
    fwd_f32 = jax.jit(functools.partial(
        transformer_forward, heads=HEADS, compute_dtype=jnp.float32))
    out = jax.block_until_ready(fwd_f32(x, params, mask))
    ref = transformer_ref(x, params, mask, heads=HEADS)
    assert out.shape == (B, N, D)
    assert bool(jnp.all(jnp.isfinite(out)))
    assert bool(jnp.allclose(out, ref, atol=2e-2, rtol=2e-2)), "f32 mismatch vs reference"

    # bf16 production path (MXU-friendly, f32 accumulation): exercise + sanity bound.
    fwd_bf16 = jax.jit(functools.partial(
        transformer_forward, heads=HEADS, compute_dtype=jnp.bfloat16))
    out_bf16 = jax.block_until_ready(fwd_bf16(x, params, mask))
    assert bool(jnp.all(jnp.isfinite(out_bf16)))
    assert float(jnp.max(jnp.abs(out_bf16.astype(jnp.float32) - ref))) < 0.5

    print("KERNEL_OK")
</pallas_src>

<mosaic_0001>
module attributes {stable_mosaic.version = 11 : i64} {
  func.func @_ln_matmul_kernel(%arg0: i32, %arg1: memref<16x32xf32, #tpu.memory_space<vmem>>, %arg2: memref<1x32xf32, #tpu.memory_space<vmem>>, %arg3: memref<1x32xf32, #tpu.memory_space<vmem>>, %arg4: memref<32x96xf32, #tpu.memory_space<vmem>>, %arg5: memref<1x96xf32, #tpu.memory_space<vmem>>, %arg6: memref<16x96xf32, #tpu.memory_space<vmem>>) attributes {dimension_semantics = [#tpu.dimension_semantics<parallel>], iteration_bounds = array<i64: 1>, scalar_prefetch = 0 : i64, scratch_operands = 0 : i64, tpu.core_type = #tpu.core_type<tc>, window_params = [{transform_indices = @transform_0, window_bounds = array<i64: 16, 32>}, {pipeline_mode = #tpu.pipeline_mode<synchronous>, transform_indices = @transform_1, window_bounds = array<i64: 1, 32>}, {pipeline_mode = #tpu.pipeline_mode<synchronous>, transform_indices = @transform_2, window_bounds = array<i64: 1, 32>}, {pipeline_mode = #tpu.pipeline_mode<synchronous>, transform_indices = @transform_3, window_bounds = array<i64: 32, 96>}, {pipeline_mode = #tpu.pipeline_mode<synchronous>, transform_indices = @transform_4, window_bounds = array<i64: 1, 96>}, {transform_indices = @transform_5, window_bounds = array<i64: 16, 96>}]} {
    %c0 = arith.constant 0 : index
    %c0_0 = arith.constant 0 : index
    %0 = vector.load %arg1[%c0, %c0_0] : memref<16x32xf32, #tpu.memory_space<vmem>>, vector<16x32xf32>
    %cst = arith.constant dense<0.000000e+00> : vector<16xf32>
    %1 = vector.multi_reduction <add>, %0, %cst [1] : vector<16x32xf32> to vector<16xf32>
    %2 = vector.shape_cast %1 : vector<16xf32> to vector<16x1xf32>
    %cst_1 = arith.constant 3.200000e+01 : f32
    %3 = vector.broadcast %cst_1 : f32 to vector<16x1xf32>
    %4 = arith.divf %2, %3 : vector<16x1xf32>
    %5 = vector.broadcast %4 : vector<16x1xf32> to vector<16x32xf32>
    %6 = arith.subf %0, %5 : vector<16x32xf32>
    %7 = arith.mulf %6, %6 : vector<16x32xf32>
    %cst_2 = arith.constant dense<0.000000e+00> : vector<16xf32>
    %8 = vector.multi_reduction <add>, %7, %cst_2 [1] : vector<16x32xf32> to vector<16xf32>
    %9 = vector.shape_cast %8 : vector<16xf32> to vector<16x1xf32>
    %cst_3 = arith.constant 3.200000e+01 : f32
    %10 = vector.broadcast %cst_3 : f32 to vector<16x1xf32>
    %11 = arith.divf %9, %10 : vector<16x1xf32>
    %cst_4 = arith.constant 9.99999974E-6 : f32
    %12 = vector.broadcast %cst_4 : f32 to vector<16x1xf32>
    %13 = arith.addf %11, %12 : vector<16x1xf32>
    %14 = math.rsqrt %13 : vector<16x1xf32>
    %15 = vector.broadcast %14 : vector<16x1xf32> to vector<16x32xf32>
    %16 = arith.mulf %6, %15 : vector<16x32xf32>
    %c0_5 = arith.constant 0 : index
    %c0_6 = arith.constant 0 : index
    %17 = vector.load %arg2[%c0_5, %c0_6] : memref<1x32xf32, #tpu.memory_space<vmem>>, vector<1x32xf32>
    %18 = vector.broadcast %17 : vector<1x32xf32> to vector<16x32xf32>
    %19 = arith.mulf %16, %18 : vector<16x32xf32>
    %c0_7 = arith.constant 0 : index
    %c0_8 = arith.constant 0 : index
    %20 = vector.load %arg3[%c0_7, %c0_8] : memref<1x32xf32, #tpu.memory_space<vmem>>, vector<1x32xf32>
    %21 = vector.broadcast %20 : vector<1x32xf32> to vector<16x32xf32>
    %22 = arith.addf %19, %21 : vector<16x32xf32>
    %c0_9 = arith.constant 0 : index
    %c0_10 = arith.constant 0 : index
    %23 = vector.load %arg4[%c0_9, %c0_10] : memref<32x96xf32, #tpu.memory_space<vmem>>, vector<32x96xf32>
    %cst_11 = arith.constant dense<0.000000e+00> : vector<16x96xf32>
    %24 = tpu.matmul %22, %23, %cst_11 {dimension_numbers = #tpu.dot_dimension_numbers<[1], [0], [0], [1], [0, 0, 1, 1], [], []>} : vector<16x32xf32>, vector<32x96xf32>, vector<16x96xf32> -> vector<16x96xf32>
    %c0_12 = arith.constant 0 : index
    %c0_13 = arith.constant 0 : index
    %25 = vector.load %arg5[%c0_12, %c0_13] : memref<1x96xf32, #tpu.memory_space<vmem>>, vector<1x96xf32>
    %26 = vector.broadcast %25 : vector<1x96xf32> to vector<16x96xf32>
    %27 = arith.addf %24, %26 : vector<16x96xf32>
    %c0_14 = arith.constant 0 : index
    %c0_15 = arith.constant 0 : index
    %28 = vector.load %arg6[%c0_14, %c0_15] : memref<16x96xf32, #tpu.memory_space<vmem>>, vector<16x96xf32>
    tpu.vector_store %arg6[%c0_14, %c0_15], %27 {strides = array<i32>} : memref<16x96xf32, #tpu.memory_space<vmem>>, vector<16x96xf32>,
    return
  }
  func.func @transform_0(%arg0: i32) -> (i32, i32) {
    %c0_i32 = arith.constant 0 : i32
    %c0_i32_0 = arith.constant 0 : i32
    return %arg0, %c0_i32 : i32, i32
  }
  func.func @transform_1(%arg0: i32) -> (i32, i32) {
    %c0_i32 = arith.constant 0 : i32
    %c0_i32_0 = arith.constant 0 : i32
    %c0_i32_1 = arith.constant 0 : i32
    return %c0_i32, %c0_i32_0 : i32, i32
  }
  func.func @transform_2(%arg0: i32) -> (i32, i32) {
    %c0_i32 = arith.constant 0 : i32
    %c0_i32_0 = arith.constant 0 : i32
    %c0_i32_1 = arith.constant 0 : i32
    return %c0_i32, %c0_i32_0 : i32, i32
  }
  func.func @transform_3(%arg0: i32) -> (i32, i32) {
    %c0_i32 = arith.constant 0 : i32
    %c0_i32_0 = arith.constant 0 : i32
    %c0_i32_1 = arith.constant 0 : i32
    return %c0_i32, %c0_i32_0 : i32, i32
  }
  func.func @transform_4(%arg0: i32) -> (i32, i32) {
    %c0_i32 = arith.constant 0 : i32
    %c0_i32_0 = arith.constant 0 : i32
    %c0_i32_1 = arith.constant 0 : i32
    return %c0_i32, %c0_i32_0 : i32, i32
  }
  func.func @transform_5(%arg0: i32) -> (i32, i32) {
    %c0_i32 = arith.constant 0 : i32
    %c0_i32_0 = arith.constant 0 : i32
    return %arg0, %c0_i32 : i32, i32
  }
}

module attributes {stable_mosaic.version = 11 : i64} {
  func.func @_attention_kernel(%arg0: i32, %arg1: i32, %arg2: memref<1x1x8x8xf32, #tpu.memory_space<vmem>>, %arg3: memref<1x1x8x8xf32, #tpu.memory_space<vmem>>, %arg4: memref<1x1x8x8xf32, #tpu.memory_space<vmem>>, %arg5: memref<1x8x8xf32, #tpu.memory_space<vmem>>, %arg6: memref<1x1x8x8xf32, #tpu.memory_space<vmem>>) attributes {dimension_semantics = [#tpu.dimension_semantics<parallel>, #tpu.dimension_semantics<parallel>], iteration_bounds = array<i64: 2, 4>, scalar_prefetch = 0 : i64, scratch_operands = 0 : i64, tpu.core_type = #tpu.core_type<tc>, window_params = [{transform_indices = @transform_0, window_bounds = array<i64: 1, 1, 8, 8>}, {transform_indices = @transform_1, window_bounds = array<i64: 1, 1, 8, 8>}, {transform_indices = @transform_2, window_bounds = array<i64: 1, 1, 8, 8>}, {transform_indices = @transform_3, window_bounds = array<i64: 1, 8, 8>}, {transform_indices = @transform_4, window_bounds = array<i64: 1, 1, 8, 8>}]} {
    %c0 = arith.constant 0 : index
    %c0_0 = arith.constant 0 : index
    %c0_1 = arith.constant 0 : index
    %c0_2 = arith.constant 0 : index
    %0 = vector.load %arg2[%c0, %c0_0, %c0_1, %c0_2] : memref<1x1x8x8xf32, #tpu.memory_space<vmem>>, vector<1x1x8x8xf32>
    %1 = vector.shape_cast %0 : vector<1x1x8x8xf32> to vector<8x8xf32>
    %c0_3 = arith.constant 0 : index
    %c0_4 = arith.constant 0 : index
    %c0_5 = arith.constant 0 : index
    %c0_6 = arith.constant 0 : index
    %2 = vector.load %arg3[%c0_3, %c0_4, %c0_5, %c0_6] : memref<1x1x8x8xf32, #tpu.memory_space<vmem>>, vector<1x1x8x8xf32>
    %3 = vector.shape_cast %2 : vector<1x1x8x8xf32> to vector<8x8xf32>
    %c0_7 = arith.constant 0 : index
    %c0_8 = arith.constant 0 : index
    %c0_9 = arith.constant 0 : index
    %c0_10 = arith.constant 0 : index
    %4 = vector.load %arg4[%c0_7, %c0_8, %c0_9, %c0_10] : memref<1x1x8x8xf32, #tpu.memory_space<vmem>>, vector<1x1x8x8xf32>
    %5 = vector.shape_cast %4 : vector<1x1x8x8xf32> to vector<8x8xf32>
    %cst = arith.constant dense<0.000000e+00> : vector<8x8xf32>
    %6 = tpu.matmul %1, %3, %cst {dimension_numbers = #tpu.dot_dimension_numbers<[1], [1], [0], [0], [0, 0, 1, 0], [], []>} : vector<8x8xf32>, vector<8x8xf32>, vector<8x8xf32> -> vector<8x8xf32>
    %cst_11 = arith.constant 0.176776692 : f32
    %7 = vector.broadcast %cst_11 : f32 to vector<8x8xf32>
    %8 = arith.mulf %6, %7 : vector<8x8xf32>
    %c0_12 = arith.constant 0 : index
    %c0_13 = arith.constant 0 : index
    %c0_14 = arith.constant 0 : index
    %9 = vector.load %arg5[%c0_12, %c0_13, %c0_14] : memref<1x8x8xf32, #tpu.memory_space<vmem>>, vector<1x8x8xf32>
    %10 = vector.shape_cast %9 : vector<1x8x8xf32> to vector<8x8xf32>
    %11 = arith.addf %8, %10 : vector<8x8xf32>
    %cst_15 = arith.constant dense<0xFF800000> : vector<8xf32>
    %12 = vector.multi_reduction <maximumf>, %11, %cst_15 [1] : vector<8x8xf32> to vector<8xf32>
    %13 = vector.shape_cast %12 : vector<8xf32> to vector<8x1xf32>
    %14 = vector.broadcast %13 : vector<8x1xf32> to vector<8x8xf32>
    %15 = arith.subf %11, %14 : vector<8x8xf32>
    %16 = math.exp %15 : vector<8x8xf32>
    %cst_16 = arith.constant dense<0.000000e+00> : vector<8xf32>
    %17 = vector.multi_reduction <add>, %16, %cst_16 [1] : vector<8x8xf32> to vector<8xf32>
    %18 = vector.shape_cast %17 : vector<8xf32> to vector<8x1xf32>
    %19 = tpu.reciprocal %18 : vector<8x1xf32> -> vector<8x1xf32>
    %20 = vector.broadcast %19 : vector<8x1xf32> to vector<8x8xf32>
    %21 = arith.mulf %16, %20 : vector<8x8xf32>
    %cst_17 = arith.constant dense<0.000000e+00> : vector<8x8xf32>
    %22 = tpu.matmul %21, %5, %cst_17 {dimension_numbers = #tpu.dot_dimension_numbers<[1], [0], [0], [1], [0, 0, 1, 1], [], []>} : vector<8x8xf32>, vector<8x8xf32>, vector<8x8xf32> -> vector<8x8xf32>
    %c0_18 = arith.constant 0 : index
    %c0_19 = arith.constant 0 : index
    %c0_20 = arith.constant 0 : index
    %c0_21 = arith.constant 0 : index
    %23 = vector.load %arg6[%c0_18, %c0_19, %c0_20, %c0_21] : memref<1x1x8x8xf32, #tpu.memory_space<vmem>>, vector<1x1x8x8xf32>
    %24 = vector.shape_cast %23 : vector<1x1x8x8xf32> to vector<8x8xf32>
    %25 = vector.shape_cast %22 : vector<8x8xf32> to vector<1x1x8x8xf32>
    tpu.vector_store %arg6[%c0_18, %c0_19, %c0_20, %c0_21], %25 {strides = array<i32>} : memref<1x1x8x8xf32, #tpu.memory_space<vmem>>, vector<1x1x8x8xf32>,
    return
  }
  func.func @transform_0(%arg0: i32, %arg1: i32) -> (i32, i32, i32, i32) {
    %c0_i32 = arith.constant 0 : i32
    %c0_i32_0 = arith.constant 0 : i32
    %c0_i32_1 = arith.constant 0 : i32
    return %arg0, %arg1, %c0_i32, %c0_i32_0 : i32, i32, i32, i32
  }
  func.func @transform_1(%arg0: i32, %arg1: i32) -> (i32, i32, i32, i32) {
    %c0_i32 = arith.constant 0 : i32
    %c0_i32_0 = arith.constant 0 : i32
    %c0_i32_1 = arith.constant 0 : i32
    return %arg0, %arg1, %c0_i32, %c0_i32_0 : i32, i32, i32, i32
  }
  func.func @transform_2(%arg0: i32, %arg1: i32) -> (i32, i32, i32, i32) {
    %c0_i32 = arith.constant 0 : i32
    %c0_i32_0 = arith.constant 0 : i32
    %c0_i32_1 = arith.constant 0 : i32
    return %arg0, %arg1, %c0_i32, %c0_i32_0 : i32, i32, i32, i32
  }
  func.func @transform_3(%arg0: i32, %arg1: i32) -> (i32, i32, i32) {
    %c0_i32 = arith.constant 0 : i32
    %c0_i32_0 = arith.constant 0 : i32
    %c0_i32_1 = arith.constant 0 : i32
    return %arg0, %c0_i32, %c0_i32_0 : i32, i32, i32
  }
  func.func @transform_4(%arg0: i32, %arg1: i32) -> (i32, i32, i32, i32) {
    %c0_i32 = arith.constant 0 : i32
    %c0_i32_0 = arith.constant 0 : i32
    %c0_i32_1 = arith.constant 0 : i32
    return %arg0, %arg1, %c0_i32, %c0_i32_0 : i32, i32, i32, i32
  }
}

module attributes {stable_mosaic.version = 11 : i64} {
  func.func @_matmul_bias_res_kernel(%arg0: i32, %arg1: memref<16x32xf32, #tpu.memory_space<vmem>>, %arg2: memref<32x32xf32, #tpu.memory_space<vmem>>, %arg3: memref<1x32xf32, #tpu.memory_space<vmem>>, %arg4: memref<16x32xf32, #tpu.memory_space<vmem>>, %arg5: memref<16x32xf32, #tpu.memory_space<vmem>>) attributes {dimension_semantics = [#tpu.dimension_semantics<parallel>], iteration_bounds = array<i64: 1>, scalar_prefetch = 0 : i64, scratch_operands = 0 : i64, tpu.core_type = #tpu.core_type<tc>, window_params = [{transform_indices = @transform_0, window_bounds = array<i64: 16, 32>}, {pipeline_mode = #tpu.pipeline_mode<synchronous>, transform_indices = @transform_1, window_bounds = array<i64: 32, 32>}, {pipeline_mode = #tpu.pipeline_mode<synchronous>, transform_indices = @transform_2, window_bounds = array<i64: 1, 32>}, {transform_indices = @transform_3, window_bounds = array<i64: 16, 32>}, {transform_indices = @transform_4, window_bounds = array<i64: 16, 32>}]} {
    %c0 = arith.constant 0 : index
    %c0_0 = arith.constant 0 : index
    %0 = vector.load %arg1[%c0, %c0_0] : memref<16x32xf32, #tpu.memory_space<vmem>>, vector<16x32xf32>
    %c0_1 = arith.constant 0 : index
    %c0_2 = arith.constant 0 : index
    %1 = vector.load %arg2[%c0_1, %c0_2] : memref<32x32xf32, #tpu.memory_space<vmem>>, vector<32x32xf32>
    %cst = arith.constant dense<0.000000e+00> : vector<16x32xf32>
    %2 = tpu.matmul %0, %1, %cst {dimension_numbers = #tpu.dot_dimension_numbers<[1], [0], [0], [1], [0, 0, 1, 1], [], []>} : vector<16x32xf32>, vector<32x32xf32>, vector<16x32xf32> -> vector<16x32xf32>
    %c0_3 = arith.constant 0 : index
    %c0_4 = arith.constant 0 : index
    %3 = vector.load %arg3[%c0_3, %c0_4] : memref<1x32xf32, #tpu.memory_space<vmem>>, vector<1x32xf32>
    %4 = vector.broadcast %3 : vector<1x32xf32> to vector<16x32xf32>
    %5 = arith.addf %2, %4 : vector<16x32xf32>
    %c0_5 = arith.constant 0 : index
    %c0_6 = arith.constant 0 : index
    %6 = vector.load %arg4[%c0_5, %c0_6] : memref<16x32xf32, #tpu.memory_space<vmem>>, vector<16x32xf32>
    %7 = arith.addf %5, %6 : vector<16x32xf32>
    %c0_7 = arith.constant 0 : index
    %c0_8 = arith.constant 0 : index
    %8 = vector.load %arg5[%c0_7, %c0_8] : memref<16x32xf32, #tpu.memory_space<vmem>>, vector<16x32xf32>
    tpu.vector_store %arg5[%c0_7, %c0_8], %7 {strides = array<i32>} : memref<16x32xf32, #tpu.memory_space<vmem>>, vector<16x32xf32>,
    return
  }
  func.func @transform_0(%arg0: i32) -> (i32, i32) {
    %c0_i32 = arith.constant 0 : i32
    %c0_i32_0 = arith.constant 0 : i32
    return %arg0, %c0_i32 : i32, i32
  }
  func.func @transform_1(%arg0: i32) -> (i32, i32) {
    %c0_i32 = arith.constant 0 : i32
    %c0_i32_0 = arith.constant 0 : i32
    %c0_i32_1 = arith.constant 0 : i32
    return %c0_i32, %c0_i32_0 : i32, i32
  }
  func.func @transform_2(%arg0: i32) -> (i32, i32) {
    %c0_i32 = arith.constant 0 : i32
    %c0_i32_0 = arith.constant 0 : i32
    %c0_i32_1 = arith.constant 0 : i32
    return %c0_i32, %c0_i32_0 : i32, i32
  }
  func.func @transform_3(%arg0: i32) -> (i32, i32) {
    %c0_i32 = arith.constant 0 : i32
    %c0_i32_0 = arith.constant 0 : i32
    return %arg0, %c0_i32 : i32, i32
  }
  func.func @transform_4(%arg0: i32) -> (i32, i32) {
    %c0_i32 = arith.constant 0 : i32
    %c0_i32_0 = arith.constant 0 : i32
    return %arg0, %c0_i32 : i32, i32
  }
}

module attributes {stable_mosaic.version = 11 : i64} {
  func.func @_ln_ffn_res_kernel(%arg0: i32, %arg1: memref<16x32xf32, #tpu.memory_space<vmem>>, %arg2: memref<1x32xf32, #tpu.memory_space<vmem>>, %arg3: memref<1x32xf32, #tpu.memory_space<vmem>>, %arg4: memref<32x64xf32, #tpu.memory_space<vmem>>, %arg5: memref<1x64xf32, #tpu.memory_space<vmem>>, %arg6: memref<64x32xf32, #tpu.memory_space<vmem>>, %arg7: memref<1x32xf32, #tpu.memory_space<vmem>>, %arg8: memref<16x32xf32, #tpu.memory_space<vmem>>) attributes {dimension_semantics = [#tpu.dimension_semantics<parallel>], iteration_bounds = array<i64: 1>, scalar_prefetch = 0 : i64, scratch_operands = 0 : i64, tpu.core_type = #tpu.core_type<tc>, window_params = [{transform_indices = @transform_0, window_bounds = array<i64: 16, 32>}, {pipeline_mode = #tpu.pipeline_mode<synchronous>, transform_indices = @transform_1, window_bounds = array<i64: 1, 32>}, {pipeline_mode = #tpu.pipeline_mode<synchronous>, transform_indices = @transform_2, window_bounds = array<i64: 1, 32>}, {pipeline_mode = #tpu.pipeline_mode<synchronous>, transform_indices = @transform_3, window_bounds = array<i64: 32, 64>}, {pipeline_mode = #tpu.pipeline_mode<synchronous>, transform_indices = @transform_4, window_bounds = array<i64: 1, 64>}, {pipeline_mode = #tpu.pipeline_mode<synchronous>, transform_indices = @transform_5, window_bounds = array<i64: 64, 32>}, {pipeline_mode = #tpu.pipeline_mode<synchronous>, transform_indices = @transform_6, window_bounds = array<i64: 1, 32>}, {transform_indices = @transform_7, window_bounds = array<i64: 16, 32>}]} {
    %c0 = arith.constant 0 : index
    %c0_0 = arith.constant 0 : index
    %0 = vector.load %arg1[%c0, %c0_0] : memref<16x32xf32, #tpu.memory_space<vmem>>, vector<16x32xf32>
    %cst = arith.constant dense<0.000000e+00> : vector<16xf32>
    %1 = vector.multi_reduction <add>, %0, %cst [1] : vector<16x32xf32> to vector<16xf32>
    %2 = vector.shape_cast %1 : vector<16xf32> to vector<16x1xf32>
    %cst_1 = arith.constant 3.200000e+01 : f32
    %3 = vector.broadcast %cst_1 : f32 to vector<16x1xf32>
    %4 = arith.divf %2, %3 : vector<16x1xf32>
    %5 = vector.broadcast %4 : vector<16x1xf32> to vector<16x32xf32>
    %6 = arith.subf %0, %5 : vector<16x32xf32>
    %7 = arith.mulf %6, %6 : vector<16x32xf32>
    %cst_2 = arith.constant dense<0.000000e+00> : vector<16xf32>
    %8 = vector.multi_reduction <add>, %7, %cst_2 [1] : vector<16x32xf32> to vector<16xf32>
    %9 = vector.shape_cast %8 : vector<16xf32> to vector<16x1xf32>
    %cst_3 = arith.constant 3.200000e+01 : f32
    %10 = vector.broadcast %cst_3 : f32 to vector<16x1xf32>
    %11 = arith.divf %9, %10 : vector<16x1xf32>
    %cst_4 = arith.constant 9.99999974E-6 : f32
    %12 = vector.broadcast %cst_4 : f32 to vector<16x1xf32>
    %13 = arith.addf %11, %12 : vector<16x1xf32>
    %14 = math.rsqrt %13 : vector<16x1xf32>
    %15 = vector.broadcast %14 : vector<16x1xf32> to vector<16x32xf32>
    %16 = arith.mulf %6, %15 : vector<16x32xf32>
    %c0_5 = arith.constant 0 : index
    %c0_6 = arith.constant 0 : index
    %17 = vector.load %arg2[%c0_5, %c0_6] : memref<1x32xf32, #tpu.memory_space<vmem>>, vector<1x32xf32>
    %18 = vector.broadcast %17 : vector<1x32xf32> to vector<16x32xf32>
    %19 = arith.mulf %16, %18 : vector<16x32xf32>
    %c0_7 = arith.constant 0 : index
    %c0_8 = arith.constant 0 : index
    %20 = vector.load %arg3[%c0_7, %c0_8] : memref<1x32xf32, #tpu.memory_space<vmem>>, vector<1x32xf32>
    %21 = vector.broadcast %20 : vector<1x32xf32> to vector<16x32xf32>
    %22 = arith.addf %19, %21 : vector<16x32xf32>
    %c0_9 = arith.constant 0 : index
    %c0_10 = arith.constant 0 : index
    %23 = vector.load %arg4[%c0_9, %c0_10] : memref<32x64xf32, #tpu.memory_space<vmem>>, vector<32x64xf32>
    %cst_11 = arith.constant dense<0.000000e+00> : vector<16x64xf32>
    %24 = tpu.matmul %22, %23, %cst_11 {dimension_numbers = #tpu.dot_dimension_numbers<[1], [0], [0], [1], [0, 0, 1, 1], [], []>} : vector<16x32xf32>, vector<32x64xf32>, vector<16x64xf32> -> vector<16x64xf32>
    %c0_12 = arith.constant 0 : index
    %c0_13 = arith.constant 0 : index
    %25 = vector.load %arg5[%c0_12, %c0_13] : memref<1x64xf32, #tpu.memory_space<vmem>>, vector<1x64xf32>
    %26 = vector.broadcast %25 : vector<1x64xf32> to vector<16x64xf32>
    %27 = arith.addf %24, %26 : vector<16x64xf32>
    %cst_14 = arith.constant 5.000000e-01 : f32
    %28 = vector.broadcast %cst_14 : f32 to vector<16x64xf32>
    %29 = arith.mulf %28, %27 : vector<16x64xf32>
    %cst_15 = arith.constant 4.471500e-02 : f32
    %30 = vector.broadcast %cst_15 : f32 to vector<16x64xf32>
    %31 = arith.mulf %30, %27 : vector<16x64xf32>
    %32 = arith.mulf %31, %27 : vector<16x64xf32>
    %33 = arith.mulf %32, %27 : vector<16x64xf32>
    %34 = arith.addf %27, %33 : vector<16x64xf32>
    %cst_16 = arith.constant 0.797884583 : f32
    %35 = vector.broadcast %cst_16 : f32 to vector<16x64xf32>
    %36 = arith.mulf %35, %34 : vector<16x64xf32>
    %37 = math.tanh %36 : vector<16x64xf32>
    %cst_17 = arith.constant 1.000000e+00 : f32
    %38 = vector.broadcast %cst_17 : f32 to vector<16x64xf32>
    %39 = arith.addf %38, %37 : vector<16x64xf32>
    %40 = arith.mulf %29, %39 : vector<16x64xf32>
    %c0_18 = arith.constant 0 : index
    %c0_19 = arith.constant 0 : index
    %41 = vector.load %arg6[%c0_18, %c0_19] : memref<64x32xf32, #tpu.memory_space<vmem>>, vector<64x32xf32>
    %cst_20 = arith.constant dense<0.000000e+00> : vector<16x32xf32>
    %42 = tpu.matmul %40, %41, %cst_20 {dimension_numbers = #tpu.dot_dimension_numbers<[1], [0], [0], [1], [0, 0, 1, 1], [], []>} : vector<16x64xf32>, vector<64x32xf32>, vector<16x32xf32> -> vector<16x32xf32>
    %c0_21 = arith.constant 0 : index
    %c0_22 = arith.constant 0 : index
    %43 = vector.load %arg7[%c0_21, %c0_22] : memref<1x32xf32, #tpu.memory_space<vmem>>, vector<1x32xf32>
    %44 = vector.broadcast %43 : vector<1x32xf32> to vector<16x32xf32>
    %45 = arith.addf %42, %44 : vector<16x32xf32>
    %46 = arith.addf %45, %0 : vector<16x32xf32>
    %c0_23 = arith.constant 0 : index
    %c0_24 = arith.constant 0 : index
    %47 = vector.load %arg8[%c0_23, %c0_24] : memref<16x32xf32, #tpu.memory_space<vmem>>, vector<16x32xf32>
    tpu.vector_store %arg8[%c0_23, %c0_24], %46 {strides = array<i32>} : memref<16x32xf32, #tpu.memory_space<vmem>>, vector<16x32xf32>,
    return
  }
  func.func @transform_0(%arg0: i32) -> (i32, i32) {
    %c0_i32 = arith.constant 0 : i32
    %c0_i32_0 = arith.constant 0 : i32
    return %arg0, %c0_i32 : i32, i32
  }
  func.func @transform_1(%arg0: i32) -> (i32, i32) {
    %c0_i32 = arith.constant 0 : i32
    %c0_i32_0 = arith.constant 0 : i32
    %c0_i32_1 = arith.constant 0 : i32
    return %c0_i32, %c0_i32_0 : i32, i32
  }
  func.func @transform_2(%arg0: i32) -> (i32, i32) {
    %c0_i32 = arith.constant 0 : i32
    %c0_i32_0 = arith.constant 0 : i32
    %c0_i32_1 = arith.constant 0 : i32
    return %c0_i32, %c0_i32_0 : i32, i32
  }
  func.func @transform_3(%arg0: i32) -> (i32, i32) {
    %c0_i32 = arith.constant 0 : i32
    %c0_i32_0 = arith.constant 0 : i32
    %c0_i32_1 = arith.constant 0 : i32
    return %c0_i32, %c0_i32_0 : i32, i32
  }
  func.func @transform_4(%arg0: i32) -> (i32, i32) {
    %c0_i32 = arith.constant 0 : i32
    %c0_i32_0 = arith.constant 0 : i32
    %c0_i32_1 = arith.constant 0 : i32
    return %c0_i32, %c0_i32_0 : i32, i32
  }
  func.func @transform_5(%arg0: i32) -> (i32, i32) {
    %c0_i32 = arith.constant 0 : i32
    %c0_i32_0 = arith.constant 0 : i32
    %c0_i32_1 = arith.constant 0 : i32
    return %c0_i32, %c0_i32_0 : i32, i32
  }
  func.func @transform_6(%arg0: i32) -> (i32, i32) {
    %c0_i32 = arith.constant 0 : i32
    %c0_i32_0 = arith.constant 0 : i32
    %c0_i32_1 = arith.constant 0 : i32
    return %c0_i32, %c0_i32_0 : i32, i32
  }
  func.func @transform_7(%arg0: i32) -> (i32, i32) {
    %c0_i32 = arith.constant 0 : i32
    %c0_i32_0 = arith.constant 0 : i32
    return %arg0, %c0_i32 : i32, i32
  }
}

module attributes {stable_mosaic.version = 11 : i64} {
  func.func @_ln_ffn_res_kernel(%arg0: i32, %arg1: memref<16x32xf32, #tpu.memory_space<vmem>>, %arg2: memref<1x32xf32, #tpu.memory_space<vmem>>, %arg3: memref<1x32xf32, #tpu.memory_space<vmem>>, %arg4: memref<32x64xf32, #tpu.memory_space<vmem>>, %arg5: memref<1x64xf32, #tpu.memory_space<vmem>>, %arg6: memref<64x32xf32, #tpu.memory_space<vmem>>, %arg7: memref<1x32xf32, #tpu.memory_space<vmem>>, %arg8: memref<16x32xf32, #tpu.memory_space<vmem>>) attributes {dimension_semantics = [#tpu.dimension_semantics<parallel>], iteration_bounds = array<i64: 1>, scalar_prefetch = 0 : i64, scratch_operands = 0 : i64, tpu.core_type = #tpu.core_type<tc>, window_params = [{transform_indices = @transform_0, window_bounds = array<i64: 16, 32>}, {pipeline_mode = #tpu.pipeline_mode<synchronous>, transform_indices = @transform_1, window_bounds = array<i64: 1, 32>}, {pipeline_mode = #tpu.pipeline_mode<synchronous>, transform_indices = @transform_2, window_bounds = array<i64: 1, 32>}, {pipeline_mode = #tpu.pipeline_mode<synchronous>, transform_indices = @transform_3, window_bounds = array<i64: 32, 64>}, {pipeline_mode = #tpu.pipeline_mode<synchronous>, transform_indices = @transform_4, window_bounds = array<i64: 1, 64>}, {pipeline_mode = #tpu.pipeline_mode<synchronous>, transform_indices = @transform_5, window_bounds = array<i64: 64, 32>}, {pipeline_mode = #tpu.pipeline_mode<synchronous>, transform_indices = @transform_6, window_bounds = array<i64: 1, 32>}, {transform_indices = @transform_7, window_bounds = array<i64: 16, 32>}]} {
    %c0 = arith.constant 0 : index
    %c0_0 = arith.constant 0 : index
    %0 = vector.load %arg1[%c0, %c0_0] : memref<16x32xf32, #tpu.memory_space<vmem>>, vector<16x32xf32>
    %cst = arith.constant dense<0.000000e+00> : vector<16xf32>
    %1 = vector.multi_reduction <add>, %0, %cst [1] : vector<16x32xf32> to vector<16xf32>
    %2 = vector.shape_cast %1 : vector<16xf32> to vector<16x1xf32>
    %cst_1 = arith.constant 3.200000e+01 : f32
    %3 = vector.broadcast %cst_1 : f32 to vector<16x1xf32>
    %4 = arith.divf %2, %3 : vector<16x1xf32>
    %5 = vector.broadcast %4 : vector<16x1xf32> to vector<16x32xf32>
    %6 = arith.subf %0, %5 : vector<16x32xf32>
    %7 = arith.mulf %6, %6 : vector<16x32xf32>
    %cst_2 = arith.constant dense<0.000000e+00> : vector<16xf32>
    %8 = vector.multi_reduction <add>, %7, %cst_2 [1] : vector<16x32xf32> to vector<16xf32>
    %9 = vector.shape_cast %8 : vector<16xf32> to vector<16x1xf32>
    %cst_3 = arith.constant 3.200000e+01 : f32
    %10 = vector.broadcast %cst_3 : f32 to vector<16x1xf32>
    %11 = arith.divf %9, %10 : vector<16x1xf32>
    %cst_4 = arith.constant 9.99999974E-6 : f32
    %12 = vector.broadcast %cst_4 : f32 to vector<16x1xf32>
    %13 = arith.addf %11, %12 : vector<16x1xf32>
    %14 = math.rsqrt %13 : vector<16x1xf32>
    %15 = vector.broadcast %14 : vector<16x1xf32> to vector<16x32xf32>
    %16 = arith.mulf %6, %15 : vector<16x32xf32>
    %c0_5 = arith.constant 0 : index
    %c0_6 = arith.constant 0 : index
    %17 = vector.load %arg2[%c0_5, %c0_6] : memref<1x32xf32, #tpu.memory_space<vmem>>, vector<1x32xf32>
    %18 = vector.broadcast %17 : vector<1x32xf32> to vector<16x32xf32>
    %19 = arith.mulf %16, %18 : vector<16x32xf32>
    %c0_7 = arith.constant 0 : index
    %c0_8 = arith.constant 0 : index
    %20 = vector.load %arg3[%c0_7, %c0_8] : memref<1x32xf32, #tpu.memory_space<vmem>>, vector<1x32xf32>
    %21 = vector.broadcast %20 : vector<1x32xf32> to vector<16x32xf32>
    %22 = arith.addf %19, %21 : vector<16x32xf32>
    %c0_9 = arith.constant 0 : index
    %c0_10 = arith.constant 0 : index
    %23 = vector.load %arg4[%c0_9, %c0_10] : memref<32x64xf32, #tpu.memory_space<vmem>>, vector<32x64xf32>
    %cst_11 = arith.constant dense<0.000000e+00> : vector<16x64xf32>
    %24 = tpu.matmul %22, %23, %cst_11 {dimension_numbers = #tpu.dot_dimension_numbers<[1], [0], [0], [1], [0, 0, 1, 1], [], []>} : vector<16x32xf32>, vector<32x64xf32>, vector<16x64xf32> -> vector<16x64xf32>
    %c0_12 = arith.constant 0 : index
    %c0_13 = arith.constant 0 : index
    %25 = vector.load %arg5[%c0_12, %c0_13] : memref<1x64xf32, #tpu.memory_space<vmem>>, vector<1x64xf32>
    %26 = vector.broadcast %25 : vector<1x64xf32> to vector<16x64xf32>
    %27 = arith.addf %24, %26 : vector<16x64xf32>
    %cst_14 = arith.constant 5.000000e-01 : f32
    %28 = vector.broadcast %cst_14 : f32 to vector<16x64xf32>
    %29 = arith.mulf %28, %27 : vector<16x64xf32>
    %cst_15 = arith.constant 4.471500e-02 : f32
    %30 = vector.broadcast %cst_15 : f32 to vector<16x64xf32>
    %31 = arith.mulf %30, %27 : vector<16x64xf32>
    %32 = arith.mulf %31, %27 : vector<16x64xf32>
    %33 = arith.mulf %32, %27 : vector<16x64xf32>
    %34 = arith.addf %27, %33 : vector<16x64xf32>
    %cst_16 = arith.constant 0.797884583 : f32
    %35 = vector.broadcast %cst_16 : f32 to vector<16x64xf32>
    %36 = arith.mulf %35, %34 : vector<16x64xf32>
    %37 = math.tanh %36 : vector<16x64xf32>
    %cst_17 = arith.constant 1.000000e+00 : f32
    %38 = vector.broadcast %cst_17 : f32 to vector<16x64xf32>
    %39 = arith.addf %38, %37 : vector<16x64xf32>
    %40 = arith.mulf %29, %39 : vector<16x64xf32>
    %c0_18 = arith.constant 0 : index
    %c0_19 = arith.constant 0 : index
    %41 = vector.load %arg6[%c0_18, %c0_19] : memref<64x32xf32, #tpu.memory_space<vmem>>, vector<64x32xf32>
    %cst_20 = arith.constant dense<0.000000e+00> : vector<16x32xf32>
    %42 = tpu.matmul %40, %41, %cst_20 {dimension_numbers = #tpu.dot_dimension_numbers<[1], [0], [0], [1], [0, 0, 1, 1], [], []>} : vector<16x64xf32>, vector<64x32xf32>, vector<16x32xf32> -> vector<16x32xf32>
    %c0_21 = arith.constant 0 : index
    %c0_22 = arith.constant 0 : index
    %43 = vector.load %arg7[%c0_21, %c0_22] : memref<1x32xf32, #tpu.memory_space<vmem>>, vector<1x32xf32>
    %44 = vector.broadcast %43 : vector<1x32xf32> to vector<16x32xf32>
    %45 = arith.addf %42, %44 : vector<16x32xf32>
    %46 = arith.addf %45, %0 : vector<16x32xf32>
    %c0_23 = arith.constant 0 : index
    %c0_24 = arith.constant 0 : index
    %47 = vector.load %arg8[%c0_23, %c0_24] : memref<16x32xf32, #tpu.memory_space<vmem>>, vector<16x32xf32>
    tpu.vector_store %arg8[%c0_23, %c0_24], %46 {strides = array<i32>} : memref<16x32xf32, #tpu.memory_space<vmem>>, vector<16x32xf32>,
    return
  }
  func.func @transform_0(%arg0: i32) -> (i32, i32) {
    %c0_i32 = arith.constant 0 : i32
    %c0_i32_0 = arith.constant 0 : i32
    return %arg0, %c0_i32 : i32, i32
  }
  func.func @transform_1(%arg0: i32) -> (i32, i32) {
    %c0_i32 = arith.constant 0 : i32
    %c0_i32_0 = arith.constant 0 : i32
    %c0_i32_1 = arith.constant 0 : i32
    return %c0_i32, %c0_i32_0 : i32, i32
  }
  func.func @transform_2(%arg0: i32) -> (i32, i32) {
    %c0_i32 = arith.constant 0 : i32
    %c0_i32_0 = arith.constant 0 : i32
    %c0_i32_1 = arith.constant 0 : i32
    return %c0_i32, %c0_i32_0 : i32, i32
  }
  func.func @transform_3(%arg0: i32) -> (i32, i32) {
    %c0_i32 = arith.constant 0 : i32
    %c0_i32_0 = arith.constant 0 : i32
    %c0_i32_1 = arith.constant 0 : i32
    return %c0_i32, %c0_i32_0 : i32, i32
  }
  func.func @transform_4(%arg0: i32) -> (i32, i32) {
    %c0_i32 = arith.constant 0 : i32
    %c0_i32_0 = arith.constant 0 : i32
    %c0_i32_1 = arith.constant 0 : i32
    return %c0_i32, %c0_i32_0 : i32, i32
  }
  func.func @transform_5(%arg0: i32) -> (i32, i32) {
    %c0_i32 = arith.constant 0 : i32
    %c0_i32_0 = arith.constant 0 : i32
    %c0_i32_1 = arith.constant 0 : i32
    return %c0_i32, %c0_i32_0 : i32, i32
  }
  func.func @transform_6(%arg0: i32) -> (i32, i32) {
    %c0_i32 = arith.constant 0 : i32
    %c0_i32_0 = arith.constant 0 : i32
    %c0_i32_1 = arith.constant 0 : i32
    return %c0_i32, %c0_i32_0 : i32, i32
  }
  func.func @transform_7(%arg0: i32) -> (i32, i32) {
    %c0_i32 = arith.constant 0 : i32
    %c0_i32_0 = arith.constant 0 : i32
    return %arg0, %c0_i32 : i32, i32
  }
}

</mosaic_0001>

<llo_original>
// kernel: transformer_forward.8
$region0: #{transformer_forward.8}
  #allocation0 [shape = 'u32[]', space=smem, size = 0x4, offset = 0x4, fixed_abs, tag = 'smem constant byte address 0x4 - core index']
  #allocation1 [shape = 'u32[144,128]{1,0:T(1,128)}', space=vmem, size = 0x12000, scoped, tag = 'internal scratch']
  %s0 = inlined_call_operand.vmem [shape: f32[16,32], index: 0, kind: input, shape index: {}]
  %s1 = inlined_call_operand.vmem [shape: f32[1,32], index: 1, kind: input, shape index: {}]
  %s2 = inlined_call_operand.vmem [shape: f32[1,32], index: 2, kind: input, shape index: {}]
  %s3 = inlined_call_operand.vmem [shape: f32[32,96], index: 3, kind: input, shape index: {}]
  %s4 = inlined_call_operand.vmem [shape: f32[1,96], index: 4, kind: input, shape index: {}]
  %s5 = inlined_call_operand.vmem [shape: f32[16,96], index: 5, kind: output, shape index: {}]
  %s6 = sld [smem:[#allocation0]]
  $region30: #{transformer_forward.8} parent=0
    _
  %s8 = ssub.s32 1, %s6
  %s9 = scalar_select 0, %s8, %s6
  // Predicated region
  $region2: #{transformer_forward.8} parent=0 // pred_check
    _
  $region3: #{transformer_forward.8} parent=0 // pred_check_branch
    %11 = sbr.rel (0) target = $region5
  $region4: #{transformer_forward.8} parent=0 // pred_region
    _
  $region5: #{transformer_forward.8} parent=0 // pred_fallthru
    _
  // Predicated region
  $region6: #{transformer_forward.8} parent=0 // pred_check
    _
  $region7: #{transformer_forward.8} parent=0 // pred_check_branch
    %13 = sbr.rel (0) target = $region9
  $region8: #{transformer_forward.8} parent=0 // pred_region
    _
  $region9: #{transformer_forward.8} parent=0 // pred_fallthru
    _
  // Predicated region
  $region10: #{transformer_forward.8} parent=0 // pred_check
    _
  $region11: #{transformer_forward.8} parent=0 // pred_check_branch
    %15 = sbr.rel (0) target = $region13
  $region12: #{transformer_forward.8} parent=0 // pred_region
    _
  $region13: #{transformer_forward.8} parent=0 // pred_fallthru
    _
  // Predicated region
  $region14: #{transformer_forward.8} parent=0 // pred_check
    _
  $region15: #{transformer_forward.8} parent=0 // pred_check_branch
    %17 = sbr.rel (0) target = $region17
  $region16: #{transformer_forward.8} parent=0 // pred_region
    _
  $region17: #{transformer_forward.8} parent=0 // pred_fallthru
    _
  // Predicated region
  $region18: #{transformer_forward.8} parent=0 // pred_check
    _
  $region19: #{transformer_forward.8} parent=0 // pred_check_branch
    %19 = sbr.rel (0) target = $region21
  $region20: #{transformer_forward.8} parent=0 // pred_region
    _
  $region21: #{transformer_forward.8} parent=0 // pred_fallthru
    _
  %v20 = vld [vmem:[%s0] sm:$0xff]
  %v21 = vld [vmem:[%s0 + $0x8] sm:$0xff]
  %vm22 = vcmask 261120
  %v23 = vsel %vm22, %v20, 0.0
  %24 = vadd.xlane.f32.xlu0 %v23
  %v25 = vpop.xlane.xlu0 %24
  %v26 = vsel %vm22, %v21, 0.0
  %27 = vadd.xlane.f32.xlu0 %v26
  %v28 = vpop.xlane.xlu0 %27
  %v29 = vrcp.pop 32.0
  %v30 = vmul.f32 %v25, %v29
  %v31 = vmul.f32 %v28, %v29
  %v32 = vsub.f32 %v20, %v30
  %v33 = vsub.f32 %v21, %v31
  %v34 = vmul.f32 %v32, %v32
  %v35 = vmul.f32 %v33, %v33
  %v36 = vsel %vm22, %v34, 0.0
  %37 = vadd.xlane.f32.xlu0 %v36
  %v38 = vpop.xlane.xlu0 %37
  %v39 = vsel %vm22, %v35, 0.0
  %40 = vadd.xlane.f32.xlu0 %v39
  %v41 = vpop.xlane.xlu0 %40
  %v42 = vmul.f32 %v38, %v29
  %v43 = vmul.f32 %v41, %v29
  %v44 = vadd.f32 %v42, 1e-05
  %v45 = vadd.f32 %v43, 1e-05
  %v46 = vrsqrt.pop %v44
  %v47 = vrsqrt.pop %v45
  %v48 = vmul.f32 %v32, %v46
  %v49 = vmul.f32 %v33, %v47
  %v50 = vld [vmem:[%s1] sm:$0x1]
  %v52 = vlaneseq
  %v53 = vshrl.u32 %v52, 7
  %v54 = vsub.s32 0, %v53
  %v55 = vrot.slane %v50, %v54
  %v57 = vmul.f32 %v48, %v55
  %v58 = vmul.f32 %v49, %v55
  %v59 = vld [vmem:[%s2] sm:$0x1]
  %v61 = vlaneseq
  %v62 = vshrl.u32 %v61, 7
  %v63 = vsub.s32 0, %v62
  %v64 = vrot.slane %v59, %v63
  %v66 = vadd.f32 %v57, %v64
  %v67 = vadd.f32 %v58, %v64
  %v68 = vld [vmem:[%s3] sm:$0xff]
  %v69 = vld [vmem:[%s3 + $0x8] sm:$0xff]
  %v70 = vld [vmem:[%s3 + $0x10] sm:$0xff]
  %v71 = vld [vmem:[%s3 + $0x18] sm:$0xff]
  %v72 = vld [vmem:[%s4] sm:$0x1]
  %v74 = vlaneseq
  %v75 = vshrl.u32 %v74, 7
  %v76 = vsub.s32 0, %v75
  %v77 = vrot.slane %v72, %v76
  %v80 = vsel %vm22, %v66, 0
  %v83 = vsel %vm22, %v67, 0
  %85 = vmatprep.subr.mxu0 0.0
  %86 = vmatpush1.msra.mxu0 %v68
  %87 = vmatprep.subr.mxu0 0.0
  %88 = vmatpush1.msra.mxu0 %v69
  %89 = vmatprep.subr.mxu0 0.0
  %90 = vmatpush1.msra.mxu0 %v70
  %91 = vmatprep.subr.mxu0 0.0
  %92 = vmatpush1.msra.mxu0 %v71
  %93 = vmatprep.subr.mxu0 0.0
  %94 = vmatpush1.msra.mxu0 0.0
  %95 = vmatprep.subr.mxu0 0.0
  %96 = vmatpush1.msra.mxu0 0.0
  %97 = vmatprep.subr.mxu0 0.0
  %98 = vmatpush1.msra.mxu0 0.0
  %99 = vmatprep.subr.mxu0 0.0
  %100 = vmatpush1.msra.mxu0 0.0
  %101 = vmatprep.subr.mxu0 0.0
  %102 = vmatpush1.msra.mxu0 0.0
  %103 = vmatprep.subr.mxu0 0.0
  %104 = vmatpush1.msra.mxu0 0.0
  %105 = vmatprep.subr.mxu0 0.0
  %106 = vmatpush1.msra.mxu0 0.0
  %107 = vmatprep.subr.mxu0 0.0
  %108 = vmatpush1.msra.mxu0 0.0
  %109 = vmatprep.subr.mxu0 0.0
  %110 = vmatpush1.msra.mxu0 0.0
  %111 = vmatprep.subr.mxu0 0.0
  %112 = vmatpush1.msra.mxu0 0.0
  %113 = vmatprep.subr.mxu0 0.0
  %114 = vmatpush1.msra.mxu0 0.0
  %115 = vmatprep.subr.mxu0 0.0
  %116 = vmatpush1.msra.mxu0 0.0
  %117 = vmatprep.subr.mxu0 0.0
  %118 = vmatpush1.msra.mxu0 0.0
  %119 = vmatprep.subr.mxu0 0.0
  %120 = vmatpush1.msra.mxu0 0.0
  %121 = vmatprep.subr.mxu0 0.0
  %122 = vmatpush1.msra.mxu0 0.0
  %123 = vmatprep.subr.mxu0 0.0
  %124 = vmatpush1.msra.mxu0 0.0
  %125 = vmatprep.subr.mxu0 0.0
  %126 = vmatpush1.msra.mxu0 0.0
  %127 = vmatprep.subr.mxu0 0.0
  %128 = vmatpush1.msra.mxu0 0.0
  %129 = vmatprep.subr.mxu0 0.0
  %130 = vmatpush1.msra.mxu0 0.0
  %131 = vmatprep.subr.mxu0 0.0
  %132 = vmatpush1.msra.mxu0 0.0
  %133 = vmatprep.subr.mxu0 0.0
  %134 = vmatpush1.msra.mxu0 0.0
  %135 = vmatprep.subr.mxu0 0.0
  %136 = vmatpush1.msra.mxu0 0.0
  %137 = vmatprep.subr.mxu0 0.0
  %138 = vmatpush1.msra.mxu0 0.0
  %139 = vmatprep.subr.mxu0 0.0
  %140 = vmatpush1.msra.mxu0 0.0
  %141 = vmatprep.subr.mxu0 0.0
  %142 = vmatpush1.msra.mxu0 0.0
  %143 = vmatprep.subr.mxu0 0.0
  %144 = vmatpush1.msra.mxu0 0.0
  %145 = vmatprep.subr.mxu0 0.0
  %146 = vmatpush1.msra.mxu0 0.0
  %147 = vmatprep.subr.mxu0 0.0
  %148 = vmatpush1.msra.mxu0 0.0
  %149 = vmatprep.mubr.f32.mxu0 0.0
  %150 = vmatmul.mubr.f32.gmra.mrb[0].mxu0 %v80
  %v151 = vpop.f32.mrb[0].mxu0
  %v152 = vadd.f32 %v77, %v151
  %v153 = vpop.f32.mrb[0].mxu0
  %154 = vmatprep.mubr.f32.mxu0 0.0
  %155 = vmatmul.mubr.f32.gmra.mrb[0].mxu0 %v83
  %v156 = vpop.f32.mrb[0].mxu0
  %v157 = vadd.f32 %v77, %v156
  %v158 = vpop.f32.mrb[0].mxu0
  %159 = vdwg.mxu0
  %vm160 = vcmask 785408
  %161 = vst.msk [vmem:[%s5] sm:$0xff] %vm160, %v152
  %162 = vst.msk [vmem:[%s5 + $0x8] sm:$0xff] %vm160, %v157
  // Predicated region
  $region22: #{transformer_forward.8} parent=0 // pred_check
    _
  $region23: #{transformer_forward.8} parent=0 // pred_check_branch
    %164 = sbr.rel (0) target = $region25
  $region24: #{transformer_forward.8} parent=0 // pred_region
    _
  $region25: #{transformer_forward.8} parent=0 // pred_fallthru
    _
  // Predicated region
  $region26: #{transformer_forward.8} parent=0 // pred_check
    _
  $region27: #{transformer_forward.8} parent=0 // pred_check_branch
    %166 = sbr.rel (0) target = $region29
  $region28: #{transformer_forward.8} parent=0 // pred_region
    _
  $region29: #{transformer_forward.8} parent=0 // pred_fallthru
    _

// kernel: transformer_forward.9
$region0: #{transformer_forward.9}
  #allocation0 [shape = 'u32[]', space=smem, size = 0x4, offset = 0x4, fixed_abs, tag = 'smem constant byte address 0x4 - core index']
  #allocation1 [shape = 'u32[144,128]{1,0:T(1,128)}', space=vmem, size = 0x12000, scoped, tag = 'internal scratch']
  %s0 = inlined_call_operand.vmem [shape: f32[2,4,8,8], index: 0, kind: input, shape index: {}]
  %s1 = inlined_call_operand.vmem [shape: f32[2,4,8,8], index: 1, kind: input, shape index: {}]
  %s2 = inlined_call_operand.vmem [shape: f32[2,4,8,8], index: 2, kind: input, shape index: {}]
  %s3 = inlined_call_operand.vmem [shape: f32[2,8,8], index: 3, kind: input, shape index: {}]
  %s4 = inlined_call_operand.vmem [shape: f32[2,4,8,8], index: 4, kind: output, shape index: {}]
  %s5 = sld [smem:[#allocation0]]
  $region49: #{transformer_forward.9} parent=0
    _
  %s7 = ssub.s32 1, %s5
  %s8 = scalar_select 0, %s7, %s5
  loop: start=0, step=1, limit=10
  $region2: #{transformer_forward.9} parent=0 // loop_pre_header
    _
  $region3: #{transformer_forward.9} parent=0 // loop_header
    %s10 = sphi 0, %s14
    %p11 = scmp.ge.s32.totalorder %s10, 10
    %s17 = sphi 0, %s29
    %s18 = sphi 0, %s25
    %s19 = sphi 0, %s17
    %s20 = sphi 0, %s18
    %s21 = sphi 0, %s19
    %s22 = sphi 0, %s20
    %s34 = sphi 0, %s36
    %s37 = sphi 0, %s34
    %s38 = sphi 0, %s37
    %s54 = sphi 0, %s38
    %s62 = sphi 0, %s64
    %s65 = sphi 0, %s62
    %s66 = sphi 0, %s65
    %s82 = sphi 0, %s66
    %s90 = sphi 0, %s92
    %s93 = sphi 0, %s90
    %s94 = sphi 0, %s93
    %s110 = sphi 0, %s94
    %s116 = sphi 0, %s118
    %s119 = sphi 0, %s116
    %s120 = sphi 0, %s119
    %s136 = sphi 0, %s120
    %s144 = sphi 0, %s146
    %s147 = sphi 0, %s144
    %s148 = sphi 0, %s147
    %s164 = sphi 0, %s148
  $region4: #{transformer_forward.9} parent=0 // loop_header_branch
    %13 = sbr.rel (%p11) target = $region8
  $region5: #{transformer_forward.9} parent=0 // loop_body
    %s15 = ssub.s32 %s10, 1
    %s16 = ssub.s32 %s10, 2
    %s23 = sadd.s32 1, %s18
    %p24 = scmp.ge.s32.totalorder %s23, 4
    %s25 = scalar_select %p24, 0, %s23
    %s26 = sadd.s32 1, %s17
    %s27 = scalar_select %p24, %s26, %s17
    %p28 = scmp.ge.s32.totalorder %s27, 2
    %s29 = scalar_select %p28, 0, %s27
    %s30 = ssub.s32 %s17, %s29
    %s31 = ssub.s32 %s18, %s25
    %s32 = sor.u32 %s30, %s31
    %p33 = scmp.eq.s32.totalorder %s32, 0
    %s35 = sadd.s32 %s34, 1
    %s36 = scalar_select %p33, %s34, %s35
    %p39 = pneg %p33
    %p40 = scmp.eq.s32.totalorder %s10, 7
    %p41 = por %p39, %p40
    %p42 = scmp.ne.s32.totalorder %s34, %s37
    %p43 = scmp.eq.s32.totalorder %s10, 0
    %p44 = por %p42, %p43
    %p45 = scmp.ne.s32.totalorder %s34, %s37
    %p46 = scmp.eq.s32.totalorder %s15, 7
    %p47 = por %p45, %p46
    %p48 = scmp.ne.s32.totalorder %s37, %s38
    %p49 = scmp.eq.s32.totalorder %s15, 0
    %p50 = por %p48, %p49
    %p51 = scmp.ne.s32.totalorder %s37, %s38
    %p52 = scmp.eq.s32.totalorder %s16, 7
    %p53 = por %p51, %p52
    %p55 = scmp.ne.s32.totalorder %s38, %s54
    %p56 = scmp.eq.s32.totalorder %s16, 0
    %p57 = por %p55, %p56
    %s58 = ssub.s32 %s17, %s29
    %s59 = ssub.s32 %s18, %s25
    %s60 = sor.u32 %s58, %s59
    %p61 = scmp.eq.s32.totalorder %s60, 0
    %s63 = sadd.s32 %s62, 1
    %s64 = scalar_select %p61, %s62, %s63
    %p67 = pneg %p61
    %p68 = scmp.eq.s32.totalorder %s10, 7
    %p69 = por %p67, %p68
    %p70 = scmp.ne.s32.totalorder %s62, %s65
    %p71 = scmp.eq.s32.totalorder %s10, 0
    %p72 = por %p70, %p71
    %p73 = scmp.ne.s32.totalorder %s62, %s65
    %p74 = scmp.eq.s32.totalorder %s15, 7
    %p75 = por %p73, %p74
    %p76 = scmp.ne.s32.totalorder %s65, %s66
    %p77 = scmp.eq.s32.totalorder %s15, 0
    %p78 = por %p76, %p77
    %p79 = scmp.ne.s32.totalorder %s65, %s66
    %p80 = scmp.eq.s32.totalorder %s16, 7
    %p81 = por %p79, %p80
    %p83 = scmp.ne.s32.totalorder %s66, %s82
    %p84 = scmp.eq.s32.totalorder %s16, 0
    %p85 = por %p83, %p84
    %s86 = ssub.s32 %s17, %s29
    %s87 = ssub.s32 %s18, %s25
    %s88 = sor.u32 %s86, %s87
    %p89 = scmp.eq.s32.totalorder %s88, 0
    %s91 = sadd.s32 %s90, 1
    %s92 = scalar_select %p89, %s90, %s91
    %p95 = pneg %p89
    %p96 = scmp.eq.s32.totalorder %s10, 7
    %p97 = por %p95, %p96
    %p98 = scmp.ne.s32.totalorder %s90, %s93
    %p99 = scmp.eq.s32.totalorder %s10, 0
    %p100 = por %p98, %p99
    %p101 = scmp.ne.s32.totalorder %s90, %s93
    %p102 = scmp.eq.s32.totalorder %s15, 7
    %p103 = por %p101, %p102
    %p104 = scmp.ne.s32.totalorder %s93, %s94
    %p105 = scmp.eq.s32.totalorder %s15, 0
    %p106 = por %p104, %p105
    %p107 = scmp.ne.s32.totalorder %s93, %s94
    %p108 = scmp.eq.s32.totalorder %s16, 7
    %p109 = por %p107, %p108
    %p111 = scmp.ne.s32.totalorder %s94, %s110
    %p112 = scmp.eq.s32.totalorder %s16, 0
    %p113 = por %p111, %p112
    %s114 = ssub.s32 %s17, %s29
    %p115 = scmp.eq.s32.totalorder %s114, 0
    %s117 = sadd.s32 %s116, 1
    %s118 = scalar_select %p115, %s116, %s117
    %p121 = pneg %p115
    %p122 = scmp.eq.s32.totalorder %s10, 7
    %p123 = por %p121, %p122
    %p124 = scmp.ne.s32.totalorder %s116, %s119
    %p125 = scmp.eq.s32.totalorder %s10, 0
    %p126 = por %p124, %p125
    %p127 = scmp.ne.s32.totalorder %s116, %s119
    %p128 = scmp.eq.s32.totalorder %s15, 7
    %p129 = por %p127, %p128
    %p130 = scmp.ne.s32.totalorder %s119, %s120
    %p131 = scmp.eq.s32.totalorder %s15, 0
    %p132 = por %p130, %p131
    %p133 = scmp.ne.s32.totalorder %s119, %s120
    %p134 = scmp.eq.s32.totalorder %s16, 7
    %p135 = por %p133, %p134
    %p137 = scmp.ne.s32.totalorder %s120, %s136
    %p138 = scmp.eq.s32.totalorder %s16, 0
    %p139 = por %p137, %p138
    %s140 = ssub.s32 %s17, %s29
    %s141 = ssub.s32 %s18, %s25
    %s142 = sor.u32 %s140, %s141
    %p143 = scmp.eq.s32.totalorder %s142, 0
    %s145 = sadd.s32 %s144, 1
    %s146 = scalar_select %p143, %s144, %s145
    %p149 = pneg %p143
    %p150 = scmp.eq.s32.totalorder %s10, 7
    %p151 = por %p149, %p150
    %p152 = scmp.ne.s32.totalorder %s144, %s147
    %p153 = scmp.eq.s32.totalorder %s10, 0
    %p154 = por %p152, %p153
    %p155 = scmp.ne.s32.totalorder %s144, %s147
    %p156 = scmp.eq.s32.totalorder %s15, 7
    %p157 = por %p155, %p156
    %p158 = scmp.ne.s32.totalorder %s147, %s148
    %p159 = scmp.eq.s32.totalorder %s15, 0
    %p160 = por %p158, %p159
    %p161 = scmp.ne.s32.totalorder %s147, %s148
    %p162 = scmp.eq.s32.totalorder %s16, 7
    %p163 = por %p161, %p162
    %p165 = scmp.ne.s32.totalorder %s148, %s164
    %p166 = scmp.eq.s32.totalorder %s16, 0
    %p167 = por %p165, %p166
    %p168 = scmp.le.s32.totalorder 1, %s10
    %p169 = scmp.lt.s32.totalorder %s10, 9
    %p170 = pnand %p168, %p169
    %p171 = pneg %p170
    // Predicated region
    $region9: #{transformer_forward.9} parent=5 // pred_check
      _
    $region10: #{transformer_forward.9} parent=5 // pred_check_branch
      %173 = sbr.rel (%p170) target = $region12
    $region11: #{transformer_forward.9} parent=5 // pred_region
      %s174 = ssub.s32 %s10, 1
    $region12: #{transformer_forward.9} parent=5 // pred_fallthru
      _
    %p175 = scmp.lt.s32.totalorder %s10, 8
    // Predicated region
    $region13: #{transformer_forward.9} parent=5 // pred_check
      %p176 = pneg %p175
    $region14: #{transformer_forward.9} parent=5 // pred_check_branch
      %178 = sbr.rel (%p176) target = $region16
    $region15: #{transformer_forward.9} parent=5 // pred_region
      // Predicated region
      $region17: #{transformer_forward.9} parent=15 // pred_check
        %p179 = pneg %p44
      $region18: #{transformer_forward.9} parent=15 // pred_check_branch
        %181 = sbr.rel (%p179) target = $region20
      $region19: #{transformer_forward.9} parent=15 // pred_region
        %p182 = scmp.lt.s32.totalorder %s17, 1
        %s183 = scalar_select %p182, %s17, 1
        %p184 = scmp.lt.s32.totalorder %s18, 3
        %s185 = scalar_select %p184, %s18, 3
        %s186 = smul.addr %s183, 4
        %s187 = sadd.s32 %s185, %s186
        %s188 = smul.addr %s187, 8
        %s189 = scalar_lea.vmem %s0, %s188
      $region20: #{transformer_forward.9} parent=15 // pred_fallthru
        _
      // Predicated region
      $region21: #{transformer_forward.9} parent=15 // pred_check
        %p190 = pneg %p72
      $region22: #{transformer_forward.9} parent=15 // pred_check_branch
        %192 = sbr.rel (%p190) target = $region24
      $region23: #{transformer_forward.9} parent=15 // pred_region
        %p193 = scmp.lt.s32.totalorder %s17, 1
        %s194 = scalar_select %p193, %s17, 1
        %p195 = scmp.lt.s32.totalorder %s18, 3
        %s196 = scalar_select %p195, %s18, 3
        %s197 = smul.addr %s194, 4
        %s198 = sadd.s32 %s196, %s197
        %s199 = smul.addr %s198, 8
        %s200 = scalar_lea.vmem %s1, %s199
      $region24: #{transformer_forward.9} parent=15 // pred_fallthru
        _
      // Predicated region
      $region25: #{transformer_forward.9} parent=15 // pred_check
        %p201 = pneg %p100
      $region26: #{transformer_forward.9} parent=15 // pred_check_branch
        %203 = sbr.rel (%p201) target = $region28
      $region27: #{transformer_forward.9} parent=15 // pred_region
        %p204 = scmp.lt.s32.totalorder %s17, 1
        %s205 = scalar_select %p204, %s17, 1
        %p206 = scmp.lt.s32.totalorder %s18, 3
        %s207 = scalar_select %p206, %s18, 3
        %s208 = smul.addr %s205, 4
        %s209 = sadd.s32 %s207, %s208
        %s210 = smul.addr %s209, 8
        %s211 = scalar_lea.vmem %s2, %s210
      $region28: #{transformer_forward.9} parent=15 // pred_fallthru
        _
      // Predicated region
      $region29: #{transformer_forward.9} parent=15 // pred_check
        %p212 = pneg %p126
      $region30: #{transformer_forward.9} parent=15 // pred_check_branch
        %214 = sbr.rel (%p212) target = $region32
      $region31: #{transformer_forward.9} parent=15 // pred_region
        %p215 = scmp.lt.s32.totalorder %s17, 1
        %s216 = scalar_select %p215, %s17, 1
        %s217 = smul.addr %s216, 8
        %s218 = scalar_lea.vmem %s3, %s217
      $region32: #{transformer_forward.9} parent=15 // pred_fallthru
        _
    $region16: #{transformer_forward.9} parent=5 // pred_fallthru
      _
    %p219 = scmp.le.s32.totalorder 1, %s10
    %p220 = scmp.lt.s32.totalorder %s10, 9
    %p221 = pnand %p219, %p220
    %p222 = pneg %p221
    // Predicated region
    $region33: #{transformer_forward.9} parent=5 // pred_check
      _
    $region34: #{transformer_forward.9} parent=5 // pred_check_branch
      %224 = sbr.rel (%p221) target = $region36
    $region35: #{transformer_forward.9} parent=5 // pred_region
      %s225 = ssub.s32 %s10, 1
      %p226 = scmp.lt.s32.totalorder %s19, 1
      %s227 = scalar_select %p226, %s19, 1
      %p228 = scmp.lt.s32.totalorder %s20, 3
      %s229 = scalar_select %p228, %s20, 3
      %s230 = smul.addr %s227, 4
      %s231 = sadd.s32 %s229, %s230
      %s232 = smul.addr %s231, 8
      %s233 = scalar_lea.vmem %s0, %s232
      %p234 = pneg %p50
      %p235 = pneg %p47
      %p236 = scmp.lt.s32.totalorder %s19, 1
      %s237 = scalar_select %p236, %s19, 1
      %p238 = scmp.lt.s32.totalorder %s20, 3
      %s239 = scalar_select %p238, %s20, 3
      %s240 = smul.addr %s237, 4
      %s241 = sadd.s32 %s239, %s240
      %s242 = smul.addr %s241, 8
      %s243 = scalar_lea.vmem %s1, %s242
      %p244 = pneg %p78
      %p245 = pneg %p75
      %p246 = scmp.lt.s32.totalorder %s19, 1
      %s247 = scalar_select %p246, %s19, 1
      %p248 = scmp.lt.s32.totalorder %s20, 3
      %s249 = scalar_select %p248, %s20, 3
      %s250 = smul.addr %s247, 4
      %s251 = sadd.s32 %s249, %s250
      %s252 = smul.addr %s251, 8
      %s253 = scalar_lea.vmem %s2, %s252
      %p254 = pneg %p106
      %p255 = pneg %p103
      %p256 = scmp.lt.s32.totalorder %s19, 1
      %s257 = scalar_select %p256, %s19, 1
      %s258 = smul.addr %s257, 8
      %s259 = scalar_lea.vmem %s3, %s258
      %p260 = pneg %p132
      %p261 = pneg %p129
      %p262 = pneg %p160
      %p263 = pneg %p157
      %p264 = scmp.lt.s32.totalorder %s19, 1
      %s265 = scalar_select %p264, %s19, 1
      %p266 = scmp.lt.s32.totalorder %s20, 3
      %s267 = scalar_select %p266, %s20, 3
      %s268 = smul.addr %s265, 4
      %s269 = sadd.s32 %s267, %s268
      %s270 = smul.addr %s269, 8
      %s271 = scalar_lea.vmem %s4, %s270
      %p272 = scmp.lt.s32.totalorder %s19, 1
      %s273 = scalar_select %p272, %s19, 1
      %p274 = scmp.lt.s32.totalorder %s20, 3
      %s275 = scalar_select %p274, %s20, 3
      %s276 = smul.addr %s273, 4
      %s277 = sadd.s32 %s275, %s276
      %s278 = smul.addr %s277, 8
      %s279 = scalar_lea.vmem %s0, %s278
      %p280 = scmp.lt.s32.totalorder %s19, 1
      %s281 = scalar_select %p280, %s19, 1
      %p282 = scmp.lt.s32.totalorder %s20, 3
      %s283 = scalar_select %p282, %s20, 3
      %s284 = smul.addr %s281, 4
      %s285 = sadd.s32 %s283, %s284
      %s286 = smul.addr %s285, 8
      %s287 = scalar_lea.vmem %s1, %s286
      %p288 = scmp.lt.s32.totalorder %s19, 1
      %s289 = scalar_select %p288, %s19, 1
      %p290 = scmp.lt.s32.totalorder %s20, 3
      %s291 = scalar_select %p290, %s20, 3
      %s292 = smul.addr %s289, 4
      %s293 = sadd.s32 %s291, %s292
      %s294 = smul.addr %s293, 8
      %s295 = scalar_lea.vmem %s2, %s294
      %p296 = scmp.lt.s32.totalorder %s19, 1
      %s297 = scalar_select %p296, %s19, 1
      %s298 = smul.addr %s297, 8
      %s299 = scalar_lea.vmem %s3, %s298
      %p300 = scmp.lt.s32.totalorder %s19, 1
      %s301 = scalar_select %p300, %s19, 1
      %p302 = scmp.lt.s32.totalorder %s20, 3
      %s303 = scalar_select %p302, %s20, 3
      %s304 = smul.addr %s301, 4
      %s305 = sadd.s32 %s303, %s304
      %s306 = smul.addr %s305, 8
      %s307 = scalar_lea.vmem %s4, %s306
      %v308 = vld [vmem:[%s279] sm:$0xff]
      %v309 = vld [vmem:[%s287] sm:$0xff]
      %v310 = vld [vmem:[%s295] sm:$0xff]
      %vm311 = vcmask 64512
      %v313 = vsel %vm311, %v308, 0
      %v316 = vsel %vm311, %v309, 0
      %318 = vmatprep.subr.mxu0 0.0
      %319 = vmatpush1.xpose.msra.mxu0 %v316
      %320 = vmatprep.subr.mxu0 0.0
      %321 = vmatpush1.xpose.msra.mxu0 0.0
      %322 = vmatprep.subr.mxu0 0.0
      %323 = vmatpush1.xpose.msra.mxu0 0.0
      %324 = vmatprep.subr.mxu0 0.0
      %325 = vmatpush1.xpose.msra.mxu0 0.0
      %326 = vmatprep.subr.mxu0 0.0
      %327 = vmatpush1.xpose.msra.mxu0 0.0
      %328 = vmatprep.subr.mxu0 0.0
      %329 = vmatpush1.xpose.msra.mxu0 0.0
      %330 = vmatprep.subr.mxu0 0.0
      %331 = vmatpush1.xpose.msra.mxu0 0.0
      %332 = vmatprep.subr.mxu0 0.0
      %333 = vmatpush1.xpose.msra.mxu0 0.0
      %334 = vmatprep.subr.mxu0 0.0
      %335 = vmatpush1.xpose.msra.mxu0 0.0
      %336 = vmatprep.subr.mxu0 0.0
      %337 = vmatpush1.xpose.msra.mxu0 0.0
      %338 = vmatprep.subr.mxu0 0.0
      %339 = vmatpush1.xpose.msra.mxu0 0.0
      %340 = vmatprep.subr.mxu0 0.0
      %341 = vmatpush1.xpose.msra.mxu0 0.0
      %342 = vmatprep.subr.mxu0 0.0
      %343 = vmatpush1.xpose.msra.mxu0 0.0
      %344 = vmatprep.subr.mxu0 0.0
      %345 = vmatpush1.xpose.msra.mxu0 0.0
      %346 = vmatprep.subr.mxu0 0.0
      %347 = vmatpush1.xpose.msra.mxu0 0.0
      %348 = vmatprep.subr.mxu0 0.0
      %349 = vmatpush1.xpose.msra.mxu0 0.0
      %350 = vmatprep.subr.mxu0 0.0
      %351 = vmatpush1.xpose.msra.mxu0 0.0
      %352 = vmatprep.subr.mxu0 0.0
      %353 = vmatpush1.xpose.msra.mxu0 0.0
      %354 = vmatprep.subr.mxu0 0.0
      %355 = vmatpush1.xpose.msra.mxu0 0.0
      %356 = vmatprep.subr.mxu0 0.0
      %357 = vmatpush1.xpose.msra.mxu0 0.0
      %358 = vmatprep.subr.mxu0 0.0
      %359 = vmatpush1.xpose.msra.mxu0 0.0
      %360 = vmatprep.subr.mxu0 0.0
      %361 = vmatpush1.xpose.msra.mxu0 0.0
      %362 = vmatprep.subr.mxu0 0.0
      %363 = vmatpush1.xpose.msra.mxu0 0.0
      %364 = vmatprep.subr.mxu0 0.0
      %365 = vmatpush1.xpose.msra.mxu0 0.0
      %366 = vmatprep.subr.mxu0 0.0
      %367 = vmatpush1.xpose.msra.mxu0 0.0
      %368 = vmatprep.subr.mxu0 0.0
      %369 = vmatpush1.xpose.msra.mxu0 0.0
      %370 = vmatprep.subr.mxu0 0.0
      %371 = vmatpush1.xpose.msra.mxu0 0.0
      %372 = vmatprep.subr.mxu0 0.0
      %373 = vmatpush1.xpose.msra.mxu0 0.0
      %374 = vmatprep.subr.mxu0 0.0
      %375 = vmatpush1.xpose.msra.mxu0 0.0
      %376 = vmatprep.subr.mxu0 0.0
      %377 = vmatpush1.xpose.msra.mxu0 0.0
      %378 = vmatprep.subr.mxu0 0.0
      %379 = vmatpush1.xpose.msra.mxu0 0.0
      %380 = vmatprep.subr.mxu0 0.0
      %381 = vmatpush1.xpose.msra.mxu0 0.0
      %382 = vmatprep.mubr.f32.mxu0 0.0
      %383 = vmatmul.mubr.f32.gmra.mrb[0].mxu0 %v313
      %v384 = vpop.f32.mrb[0].mxu0
      %v385 = vadd.f32 0.0, %v384
      %v386 = vpop.f32.mrb[0].mxu0
      %387 = vdwg.mxu0
      %v388 = vmul.f32 %v385, 0.17677669
      %v389 = vld [vmem:[%s299] sm:$0xff]
      %v390 = vadd.f32 %v388, %v389
      %v391 = vsel %vm311, %v390, -inf
      %392 = vmax.xlane.f32.xlu0 %v391
      %v393 = vpop.xlane.xlu0 %392
      %v394 = vsub.f32 %v390, %v393
      %v395 = vmul.f32 %v394, 1.442695
      %v396 = vpow.pop %v395
      %v397 = vsel %vm311, %v396, 0.0
      %398 = vadd.xlane.f32.xlu0 %v397
      %v399 = vpop.xlane.xlu0 %398
      %v400 = vrcp.pop %v399
      %v401 = vmul.f32 %v396, %v400
      %v403 = vsel %vm311, %v401, 0
      %405 = vmatprep.subr.mxu0 0.0
      %406 = vmatpush1.msra.mxu0 %v310
      %407 = vmatprep.subr.mxu0 0.0
      %408 = vmatpush1.msra.mxu0 0.0
      %409 = vmatprep.subr.mxu0 0.0
      %410 = vmatpush1.msra.mxu0 0.0
      %411 = vmatprep.subr.mxu0 0.0
      %412 = vmatpush1.msra.mxu0 0.0
      %413 = vmatprep.subr.mxu0 0.0
      %414 = vmatpush1.msra.mxu0 0.0
      %415 = vmatprep.subr.mxu0 0.0
      %416 = vmatpush1.msra.mxu0 0.0
      %417 = vmatprep.subr.mxu0 0.0
      %418 = vmatpush1.msra.mxu0 0.0
      %419 = vmatprep.subr.mxu0 0.0
      %420 = vmatpush1.msra.mxu0 0.0
      %421 = vmatprep.subr.mxu0 0.0
      %422 = vmatpush1.msra.mxu0 0.0
      %423 = vmatprep.subr.mxu0 0.0
      %424 = vmatpush1.msra.mxu0 0.0
      %425 = vmatprep.subr.mxu0 0.0
      %426 = vmatpush1.msra.mxu0 0.0
      %427 = vmatprep.subr.mxu0 0.0
      %428 = vmatpush1.msra.mxu0 0.0
      %429 = vmatprep.subr.mxu0 0.0
      %430 = vmatpush1.msra.mxu0 0.0
      %431 = vmatprep.subr.mxu0 0.0
      %432 = vmatpush1.msra.mxu0 0.0
      %433 = vmatprep.subr.mxu0 0.0
      %434 = vmatpush1.msra.mxu0 0.0
      %435 = vmatprep.subr.mxu0 0.0
      %436 = vmatpush1.msra.mxu0 0.0
      %437 = vmatprep.subr.mxu0 0.0
      %438 = vmatpush1.msra.mxu0 0.0
      %439 = vmatprep.subr.mxu0 0.0
      %440 = vmatpush1.msra.mxu0 0.0
      %441 = vmatprep.subr.mxu0 0.0
      %442 = vmatpush1.msra.mxu0 0.0
      %443 = vmatprep.subr.mxu0 0.0
      %444 = vmatpush1.msra.mxu0 0.0
      %445 = vmatprep.subr.mxu0 0.0
      %446 = vmatpush1.msra.mxu0 0.0
      %447 = vmatprep.subr.mxu0 0.0
      %448 = vmatpush1.msra.mxu0 0.0
      %449 = vmatprep.subr.mxu0 0.0
      %450 = vmatpush1.msra.mxu0 0.0
      %451 = vmatprep.subr.mxu0 0.0
      %452 = vmatpush1.msra.mxu0 0.0
      %453 = vmatprep.subr.mxu0 0.0
      %454 = vmatpush1.msra.mxu0 0.0
      %455 = vmatprep.subr.mxu0 0.0
      %456 = vmatpush1.msra.mxu0 0.0
      %457 = vmatprep.subr.mxu0 0.0
      %458 = vmatpush1.msra.mxu0 0.0
      %459 = vmatprep.subr.mxu0 0.0
      %460 = vmatpush1.msra.mxu0 0.0
      %461 = vmatprep.subr.mxu0 0.0
      %462 = vmatpush1.msra.mxu0 0.0
      %463 = vmatprep.subr.mxu0 0.0
      %464 = vmatpush1.msra.mxu0 0.0
      %465 = vmatprep.subr.mxu0 0.0
      %466 = vmatpush1.msra.mxu0 0.0
      %467 = vmatprep.subr.mxu0 0.0
      %468 = vmatpush1.msra.mxu0 0.0
      %469 = vmatprep.mubr.f32.mxu0 0.0
      %470 = vmatmul.mubr.f32.gmra.mrb[0].mxu0 %v403
      %v471 = vpop.f32.mrb[0].mxu0
      %v472 = vadd.f32 0.0, %v471
      %v473 = vpop.f32.mrb[0].mxu0
      %474 = vdwg.mxu0
      %475 = vst.msk [vmem:[%s307] sm:$0xff] %vm311, %v472
      %p476 = scmp.lt.s32.totalorder %s19, 1
      %s477 = scalar_select %p476, %s19, 1
      %p478 = scmp.lt.s32.totalorder %s20, 3
      %s479 = scalar_select %p478, %s20, 3
      %s480 = smul.addr %s477, 4
      %s481 = sadd.s32 %s479, %s480
      %s482 = smul.addr %s481, 8
      %s483 = scalar_lea.vmem %s4, %s482
      // Predicated region
      $region37: #{transformer_forward.9} parent=35 // pred_check
        %p484 = pneg %p157
      $region38: #{transformer_forward.9} parent=35 // pred_check_branch
        %486 = sbr.rel (%p484) target = $region40
      $region39: #{transformer_forward.9} parent=35 // pred_region
        _
      $region40: #{transformer_forward.9} parent=35 // pred_fallthru
        _
    $region36: #{transformer_forward.9} parent=5 // pred_fallthru
      _
    %p487 = scmp.le.s32.totalorder 2, %s10
    // Predicated region
    $region41: #{transformer_forward.9} parent=5 // pred_check
      %p488 = pneg %p487
    $region42: #{transformer_forward.9} parent=5 // pred_check_branch
      %490 = sbr.rel (%p488) target = $region44
    $region43: #{transformer_forward.9} parent=5 // pred_region
      %s491 = ssub.s32 %s10, 2
      // Predicated region
      $region45: #{transformer_forward.9} parent=43 // pred_check
        %p492 = pneg %p163
      $region46: #{transformer_forward.9} parent=43 // pred_check_branch
        %494 = sbr.rel (%p492) target = $region48
      $region47: #{transformer_forward.9} parent=43 // pred_region
        %p495 = scmp.lt.s32.totalorder %s21, 1
        %s496 = scalar_select %p495, %s21, 1
        %p497 = scmp.lt.s32.totalorder %s22, 3
        %s498 = scalar_select %p497, %s22, 3
        %s499 = smul.addr %s496, 4
        %s500 = sadd.s32 %s498, %s499
        %s501 = smul.addr %s500, 8
        %s502 = scalar_lea.vmem %s4, %s501
      $region48: #{transformer_forward.9} parent=43 // pred_fallthru
        _
    $region44: #{transformer_forward.9} parent=5 // pred_fallthru
      _
  $region6: #{transformer_forward.9} parent=0 // loop_footer
    %s14 = sadd.s32 1, %s10
  $region7: #{transformer_forward.9} parent=0 // loop_footer_branch
    %9 = sbr.rel target = $region3
  $region8: #{transformer_forward.9} parent=0 // loop_exit
    _

// kernel: transformer_forward.10
$region0: #{transformer_forward.10}
  #allocation0 [shape = 'u32[]', space=smem, size = 0x4, offset = 0x4, fixed_abs, tag = 'smem constant byte address 0x4 - core index']
  #allocation1 [shape = 'u32[144,128]{1,0:T(1,128)}', space=vmem, size = 0x12000, scoped, tag = 'internal scratch']
  %s0 = inlined_call_operand.vmem [shape: f32[16,32], index: 0, kind: input, shape index: {}]
  %s1 = inlined_call_operand.vmem [shape: f32[32,32], index: 1, kind: input, shape index: {}]
  %s2 = inlined_call_operand.vmem [shape: f32[1,32], index: 2, kind: input, shape index: {}]
  %s3 = inlined_call_operand.vmem [shape: f32[16,32], index: 3, kind: input, shape index: {}]
  %s4 = inlined_call_operand.vmem [shape: f32[16,32], index: 4, kind: output, shape index: {}]
  %s5 = sld [smem:[#allocation0]]
  $region26: #{transformer_forward.10} parent=0
    _
  %s7 = ssub.s32 1, %s5
  %s8 = scalar_select 0, %s7, %s5
  // Predicated region
  $region2: #{transformer_forward.10} parent=0 // pred_check
    _
  $region3: #{transformer_forward.10} parent=0 // pred_check_branch
    %10 = sbr.rel (0) target = $region5
  $region4: #{transformer_forward.10} parent=0 // pred_region
    _
  $region5: #{transformer_forward.10} parent=0 // pred_fallthru
    _
  // Predicated region
  $region6: #{transformer_forward.10} parent=0 // pred_check
    _
  $region7: #{transformer_forward.10} parent=0 // pred_check_branch
    %12 = sbr.rel (0) target = $region9
  $region8: #{transformer_forward.10} parent=0 // pred_region
    _
  $region9: #{transformer_forward.10} parent=0 // pred_fallthru
    _
  // Predicated region
  $region10: #{transformer_forward.10} parent=0 // pred_check
    _
  $region11: #{transformer_forward.10} parent=0 // pred_check_branch
    %14 = sbr.rel (0) target = $region13
  $region12: #{transformer_forward.10} parent=0 // pred_region
    _
  $region13: #{transformer_forward.10} parent=0 // pred_fallthru
    _
  // Predicated region
  $region14: #{transformer_forward.10} parent=0 // pred_check
    _
  $region15: #{transformer_forward.10} parent=0 // pred_check_branch
    %16 = sbr.rel (0) target = $region17
  $region16: #{transformer_forward.10} parent=0 // pred_region
    _
  $region17: #{transformer_forward.10} parent=0 // pred_fallthru
    _
  %v17 = vld [vmem:[%s0] sm:$0xff]
  %v18 = vld [vmem:[%s0 + $0x8] sm:$0xff]
  %v19 = vld [vmem:[%s1] sm:$0xff]
  %v20 = vld [vmem:[%s1 + $0x8] sm:$0xff]
  %v21 = vld [vmem:[%s1 + $0x10] sm:$0xff]
  %v22 = vld [vmem:[%s1 + $0x18] sm:$0xff]
  %v23 = vld [vmem:[%s2] sm:$0x1]
  %v25 = vlaneseq
  %v26 = vshrl.u32 %v25, 7
  %v27 = vsub.s32 0, %v26
  %v28 = vrot.slane %v23, %v27
  %vm30 = vcmask 261120
  %v32 = vsel %vm30, %v17, 0
  %v35 = vsel %vm30, %v18, 0
  %37 = vmatprep.subr.mxu0 0.0
  %38 = vmatpush1.msra.mxu0 %v19
  %39 = vmatprep.subr.mxu0 0.0
  %40 = vmatpush1.msra.mxu0 %v20
  %41 = vmatprep.subr.mxu0 0.0
  %42 = vmatpush1.msra.mxu0 %v21
  %43 = vmatprep.subr.mxu0 0.0
  %44 = vmatpush1.msra.mxu0 %v22
  %45 = vmatprep.subr.mxu0 0.0
  %46 = vmatpush1.msra.mxu0 0.0
  %47 = vmatprep.subr.mxu0 0.0
  %48 = vmatpush1.msra.mxu0 0.0
  %49 = vmatprep.subr.mxu0 0.0
  %50 = vmatpush1.msra.mxu0 0.0
  %51 = vmatprep.subr.mxu0 0.0
  %52 = vmatpush1.msra.mxu0 0.0
  %53 = vmatprep.subr.mxu0 0.0
  %54 = vmatpush1.msra.mxu0 0.0
  %55 = vmatprep.subr.mxu0 0.0
  %56 = vmatpush1.msra.mxu0 0.0
  %57 = vmatprep.subr.mxu0 0.0
  %58 = vmatpush1.msra.mxu0 0.0
  %59 = vmatprep.subr.mxu0 0.0
  %60 = vmatpush1.msra.mxu0 0.0
  %61 = vmatprep.subr.mxu0 0.0
  %62 = vmatpush1.msra.mxu0 0.0
  %63 = vmatprep.subr.mxu0 0.0
  %64 = vmatpush1.msra.mxu0 0.0
  %65 = vmatprep.subr.mxu0 0.0
  %66 = vmatpush1.msra.mxu0 0.0
  %67 = vmatprep.subr.mxu0 0.0
  %68 = vmatpush1.msra.mxu0 0.0
  %69 = vmatprep.subr.mxu0 0.0
  %70 = vmatpush1.msra.mxu0 0.0
  %71 = vmatprep.subr.mxu0 0.0
  %72 = vmatpush1.msra.mxu0 0.0
  %73 = vmatprep.subr.mxu0 0.0
  %74 = vmatpush1.msra.mxu0 0.0
  %75 = vmatprep.subr.mxu0 0.0
  %76 = vmatpush1.msra.mxu0 0.0
  %77 = vmatprep.subr.mxu0 0.0
  %78 = vmatpush1.msra.mxu0 0.0
  %79 = vmatprep.subr.mxu0 0.0
  %80 = vmatpush1.msra.mxu0 0.0
  %81 = vmatprep.subr.mxu0 0.0
  %82 = vmatpush1.msra.mxu0 0.0
  %83 = vmatprep.subr.mxu0 0.0
  %84 = vmatpush1.msra.mxu0 0.0
  %85 = vmatprep.subr.mxu0 0.0
  %86 = vmatpush1.msra.mxu0 0.0
  %87 = vmatprep.subr.mxu0 0.0
  %88 = vmatpush1.msra.mxu0 0.0
  %89 = vmatprep.subr.mxu0 0.0
  %90 = vmatpush1.msra.mxu0 0.0
  %91 = vmatprep.subr.mxu0 0.0
  %92 = vmatpush1.msra.mxu0 0.0
  %93 = vmatprep.subr.mxu0 0.0
  %94 = vmatpush1.msra.mxu0 0.0
  %95 = vmatprep.subr.mxu0 0.0
  %96 = vmatpush1.msra.mxu0 0.0
  %97 = vmatprep.subr.mxu0 0.0
  %98 = vmatpush1.msra.mxu0 0.0
  %99 = vmatprep.subr.mxu0 0.0
  %100 = vmatpush1.msra.mxu0 0.0
  %101 = vmatprep.mubr.f32.mxu0 0.0
  %102 = vmatmul.mubr.f32.gmra.mrb[0].mxu0 %v32
  %v103 = vpop.f32.mrb[0].mxu0
  %v104 = vadd.f32 %v28, %v103
  %v105 = vpop.f32.mrb[0].mxu0
  %106 = vmatprep.mubr.f32.mxu0 0.0
  %107 = vmatmul.mubr.f32.gmra.mrb[0].mxu0 %v35
  %v108 = vpop.f32.mrb[0].mxu0
  %v109 = vadd.f32 %v28, %v108
  %v110 = vpop.f32.mrb[0].mxu0
  %111 = vdwg.mxu0
  %v112 = vld [vmem:[%s3] sm:$0xff]
  %v113 = vld [vmem:[%s3 + $0x8] sm:$0xff]
  %v114 = vadd.f32 %v104, %v112
  %v115 = vadd.f32 %v109, %v113
  %116 = vst.msk [vmem:[%s4] sm:$0xff] %vm30, %v114
  %117 = vst.msk [vmem:[%s4 + $0x8] sm:$0xff] %vm30, %v115
  // Predicated region
  $region18: #{transformer_forward.10} parent=0 // pred_check
    _
  $region19: #{transformer_forward.10} parent=0 // pred_check_branch
    %119 = sbr.rel (0) target = $region21
  $region20: #{transformer_forward.10} parent=0 // pred_region
    _
  $region21: #{transformer_forward.10} parent=0 // pred_fallthru
    _
  // Predicated region
  $region22: #{transformer_forward.10} parent=0 // pred_check
    _
  $region23: #{transformer_forward.10} parent=0 // pred_check_branch
    %121 = sbr.rel (0) target = $region25
  $region24: #{transformer_forward.10} parent=0 // pred_region
    _
  $region25: #{transformer_forward.10} parent=0 // pred_fallthru
    _

// kernel: transformer_forward.11
$region0: #{transformer_forward.11}
  #allocation0 [shape = 'u32[]', space=smem, size = 0x4, offset = 0x4, fixed_abs, tag = 'smem constant byte address 0x4 - core index']
  #allocation1 [shape = 'u32[144,128]{1,0:T(1,128)}', space=vmem, size = 0x12000, scoped, tag = 'internal scratch']
  %s0 = inlined_call_operand.vmem [shape: f32[16,32], index: 0, kind: input, shape index: {}]
  %s1 = inlined_call_operand.vmem [shape: f32[1,32], index: 1, kind: input, shape index: {}]
  %s2 = inlined_call_operand.vmem [shape: f32[1,32], index: 2, kind: input, shape index: {}]
  %s3 = inlined_call_operand.vmem [shape: f32[32,64], index: 3, kind: input, shape index: {}]
  %s4 = inlined_call_operand.vmem [shape: f32[1,64], index: 4, kind: input, shape index: {}]
  %s5 = inlined_call_operand.vmem [shape: f32[64,32], index: 5, kind: input, shape index: {}]
  %s6 = inlined_call_operand.vmem [shape: f32[1,32], index: 6, kind: input, shape index: {}]
  %s7 = inlined_call_operand.vmem [shape: f32[16,32], index: 7, kind: output, shape index: {}]
  %s8 = sld [smem:[#allocation0]]
  $region38: #{transformer_forward.11} parent=0
    _
  %s10 = ssub.s32 1, %s8
  %s11 = scalar_select 0, %s10, %s8
  // Predicated region
  $region2: #{transformer_forward.11} parent=0 // pred_check
    _
  $region3: #{transformer_forward.11} parent=0 // pred_check_branch
    %13 = sbr.rel (0) target = $region5
  $region4: #{transformer_forward.11} parent=0 // pred_region
    _
  $region5: #{transformer_forward.11} parent=0 // pred_fallthru
    _
  // Predicated region
  $region6: #{transformer_forward.11} parent=0 // pred_check
    _
  $region7: #{transformer_forward.11} parent=0 // pred_check_branch
    %15 = sbr.rel (0) target = $region9
  $region8: #{transformer_forward.11} parent=0 // pred_region
    _
  $region9: #{transformer_forward.11} parent=0 // pred_fallthru
    _
  // Predicated region
  $region10: #{transformer_forward.11} parent=0 // pred_check
    _
  $region11: #{transformer_forward.11} parent=0 // pred_check_branch
    %17 = sbr.rel (0) target = $region13
  $region12: #{transformer_forward.11} parent=0 // pred_region
    _
  $region13: #{transformer_forward.11} parent=0 // pred_fallthru
    _
  // Predicated region
  $region14: #{transformer_forward.11} parent=0 // pred_check
    _
  $region15: #{transformer_forward.11} parent=0 // pred_check_branch
    %19 = sbr.rel (0) target = $region17
  $region16: #{transformer_forward.11} parent=0 // pred_region
    _
  $region17: #{transformer_forward.11} parent=0 // pred_fallthru
    _
  // Predicated region
  $region18: #{transformer_forward.11} parent=0 // pred_check
    _
  $region19: #{transformer_forward.11} parent=0 // pred_check_branch
    %21 = sbr.rel (0) target = $region21
  $region20: #{transformer_forward.11} parent=0 // pred_region
    _
  $region21: #{transformer_forward.11} parent=0 // pred_fallthru
    _
  // Predicated region
  $region22: #{transformer_forward.11} parent=0 // pred_check
    _
  $region23: #{transformer_forward.11} parent=0 // pred_check_branch
    %23 = sbr.rel (0) target = $region25
  $region24: #{transformer_forward.11} parent=0 // pred_region
    _
  $region25: #{transformer_forward.11} parent=0 // pred_fallthru
    _
  // Predicated region
  $region26: #{transformer_forward.11} parent=0 // pred_check
    _
  $region27: #{transformer_forward.11} parent=0 // pred_check_branch
    %25 = sbr.rel (0) target = $region29
  $region28: #{transformer_forward.11} parent=0 // pred_region
    _
  $region29: #{transformer_forward.11} parent=0 // pred_fallthru
    _
  %v26 = vld [vmem:[%s0] sm:$0xff]
  %v27 = vld [vmem:[%s0 + $0x8] sm:$0xff]
  %vm28 = vcmask 261120
  %v29 = vsel %vm28, %v26, 0.0
  %30 = vadd.xlane.f32.xlu0 %v29
  %v31 = vpop.xlane.xlu0 %30
  %v32 = vsel %vm28, %v27, 0.0
  %33 = vadd.xlane.f32.xlu0 %v32
  %v34 = vpop.xlane.xlu0 %33
  %v35 = vrcp.pop 32.0
  %v36 = vmul.f32 %v31, %v35
  %v37 = vmul.f32 %v34, %v35
  %v38 = vsub.f32 %v26, %v36
  %v39 = vsub.f32 %v27, %v37
  %v40 = vmul.f32 %v38, %v38
  %v41 = vmul.f32 %v39, %v39
  %v42 = vsel %vm28, %v40, 0.0
  %43 = vadd.xlane.f32.xlu0 %v42
  %v44 = vpop.xlane.xlu0 %43
  %v45 = vsel %vm28, %v41, 0.0
  %46 = vadd.xlane.f32.xlu0 %v45
  %v47 = vpop.xlane.xlu0 %46
  %v48 = vmul.f32 %v44, %v35
  %v49 = vmul.f32 %v47, %v35
  %v50 = vadd.f32 %v48, 1e-05
  %v51 = vadd.f32 %v49, 1e-05
  %v52 = vrsqrt.pop %v50
  %v53 = vrsqrt.pop %v51
  %v54 = vmul.f32 %v38, %v52
  %v55 = vmul.f32 %v39, %v53
  %v56 = vld [vmem:[%s1] sm:$0x1]
  %v58 = vlaneseq
  %v59 = vshrl.u32 %v58, 7
  %v60 = vsub.s32 0, %v59
  %v61 = vrot.slane %v56, %v60
  %v63 = vmul.f32 %v54, %v61
  %v64 = vmul.f32 %v55, %v61
  %v65 = vld [vmem:[%s2] sm:$0x1]
  %v67 = vlaneseq
  %v68 = vshrl.u32 %v67, 7
  %v69 = vsub.s32 0, %v68
  %v70 = vrot.slane %v65, %v69
  %v72 = vadd.f32 %v63, %v70
  %v73 = vadd.f32 %v64, %v70
  %v74 = vld [vmem:[%s3] sm:$0xff]
  %v75 = vld [vmem:[%s3 + $0x8] sm:$0xff]
  %v76 = vld [vmem:[%s3 + $0x10] sm:$0xff]
  %v77 = vld [vmem:[%s3 + $0x18] sm:$0xff]
  %v78 = vld [vmem:[%s4] sm:$0x1]
  %v80 = vlaneseq
  %v81 = vshrl.u32 %v80, 7
  %v82 = vsub.s32 0, %v81
  %v83 = vrot.slane %v78, %v82
  %v86 = vsel %vm28, %v72, 0
  %v89 = vsel %vm28, %v73, 0
  %91 = vmatprep.subr.mxu0 0.0
  %92 = vmatpush1.msra.mxu0 %v74
  %93 = vmatprep.subr.mxu0 0.0
  %94 = vmatpush1.msra.mxu0 %v75
  %95 = vmatprep.subr.mxu0 0.0
  %96 = vmatpush1.msra.mxu0 %v76
  %97 = vmatprep.subr.mxu0 0.0
  %98 = vmatpush1.msra.mxu0 %v77
  %99 = vmatprep.subr.mxu0 0.0
  %100 = vmatpush1.msra.mxu0 0.0
  %101 = vmatprep.subr.mxu0 0.0
  %102 = vmatpush1.msra.mxu0 0.0
  %103 = vmatprep.subr.mxu0 0.0
  %104 = vmatpush1.msra.mxu0 0.0
  %105 = vmatprep.subr.mxu0 0.0
  %106 = vmatpush1.msra.mxu0 0.0
  %107 = vmatprep.subr.mxu0 0.0
  %108 = vmatpush1.msra.mxu0 0.0
  %109 = vmatprep.subr.mxu0 0.0
  %110 = vmatpush1.msra.mxu0 0.0
  %111 = vmatprep.subr.mxu0 0.0
  %112 = vmatpush1.msra.mxu0 0.0
  %113 = vmatprep.subr.mxu0 0.0
  %114 = vmatpush1.msra.mxu0 0.0
  %115 = vmatprep.subr.mxu0 0.0
  %116 = vmatpush1.msra.mxu0 0.0
  %117 = vmatprep.subr.mxu0 0.0
  %118 = vmatpush1.msra.mxu0 0.0
  %119 = vmatprep.subr.mxu0 0.0
  %120 = vmatpush1.msra.mxu0 0.0
  %121 = vmatprep.subr.mxu0 0.0
  %122 = vmatpush1.msra.mxu0 0.0
  %123 = vmatprep.subr.mxu0 0.0
  %124 = vmatpush1.msra.mxu0 0.0
  %125 = vmatprep.subr.mxu0 0.0
  %126 = vmatpush1.msra.mxu0 0.0
  %127 = vmatprep.subr.mxu0 0.0
  %128 = vmatpush1.msra.mxu0 0.0
  %129 = vmatprep.subr.mxu0 0.0
  %130 = vmatpush1.msra.mxu0 0.0
  %131 = vmatprep.subr.mxu0 0.0
  %132 = vmatpush1.msra.mxu0 0.0
  %133 = vmatprep.subr.mxu0 0.0
  %134 = vmatpush1.msra.mxu0 0.0
  %135 = vmatprep.subr.mxu0 0.0
  %136 = vmatpush1.msra.mxu0 0.0
  %137 = vmatprep.subr.mxu0 0.0
  %138 = vmatpush1.msra.mxu0 0.0
  %139 = vmatprep.subr.mxu0 0.0
  %140 = vmatpush1.msra.mxu0 0.0
  %141 = vmatprep.subr.mxu0 0.0
  %142 = vmatpush1.msra.mxu0 0.0
  %143 = vmatprep.subr.mxu0 0.0
  %144 = vmatpush1.msra.mxu0 0.0
  %145 = vmatprep.subr.mxu0 0.0
  %146 = vmatpush1.msra.mxu0 0.0
  %147 = vmatprep.subr.mxu0 0.0
  %148 = vmatpush1.msra.mxu0 0.0
  %149 = vmatprep.subr.mxu0 0.0
  %150 = vmatpush1.msra.mxu0 0.0
  %151 = vmatprep.subr.mxu0 0.0
  %152 = vmatpush1.msra.mxu0 0.0
  %153 = vmatprep.subr.mxu0 0.0
  %154 = vmatpush1.msra.mxu0 0.0
  %155 = vmatprep.mubr.f32.mxu0 0.0
  %156 = vmatmul.mubr.f32.gmra.mrb[0].mxu0 %v86
  %v157 = vpop.f32.mrb[0].mxu0
  %v158 = vadd.f32 %v83, %v157
  %v159 = vpop.f32.mrb[0].mxu0
  %160 = vmatprep.mubr.f32.mxu0 0.0
  %161 = vmatmul.mubr.f32.gmra.mrb[0].mxu0 %v89
  %v162 = vpop.f32.mrb[0].mxu0
  %v163 = vadd.f32 %v83, %v162
  %v164 = vpop.f32.mrb[0].mxu0
  %165 = vdwg.mxu0
  %v166 = vmul.f32 %v158, 0.5
  %v167 = vmul.f32 %v163, 0.5
  %v168 = vmul.f32 %v158, 0.044715
  %v169 = vmul.f32 %v163, 0.044715
  %v170 = vmul.f32 %v168, %v158
  %v171 = vmul.f32 %v169, %v163
  %v172 = vmul.f32 %v170, %v158
  %v173 = vmul.f32 %v171, %v163
  %v174 = vadd.f32 %v158, %v172
  %v175 = vadd.f32 %v163, %v173
  %v176 = vmul.f32 %v174, 0.7978846
  %v177 = vmul.f32 %v175, 0.7978846
  %v178 = vtanh.pop %v176
  %v179 = vtanh.pop %v177
  %v180 = vadd.f32 %v178, 1.0
  %v181 = vadd.f32 %v179, 1.0
  %v182 = vmul.f32 %v166, %v180
  %v183 = vmul.f32 %v167, %v181
  %v184 = vld [vmem:[%s5] sm:$0xff]
  %v185 = vld [vmem:[%s5 + $0x8] sm:$0xff]
  %v186 = vld [vmem:[%s5 + $0x10] sm:$0xff]
  %v187 = vld [vmem:[%s5 + $0x18] sm:$0xff]
  %v188 = vld [vmem:[%s5 + $0x20] sm:$0xff]
  %v189 = vld [vmem:[%s5 + $0x28] sm:$0xff]
  %v190 = vld [vmem:[%s5 + $0x30] sm:$0xff]
  %v191 = vld [vmem:[%s5 + $0x38] sm:$0xff]
  %v192 = vld [vmem:[%s6] sm:$0x1]
  %v194 = vlaneseq
  %v195 = vshrl.u32 %v194, 7
  %v196 = vsub.s32 0, %v195
  %v197 = vrot.slane %v192, %v196
  %vm199 = vcmask 523264
  %v201 = vsel %vm199, %v182, 0
  %v204 = vsel %vm199, %v183, 0
  %206 = vmatprep.subr.mxu0 0.0
  %207 = vmatpush1.msra.mxu0 %v184
  %208 = vmatprep.subr.mxu0 0.0
  %209 = vmatpush1.msra.mxu0 %v185
  %210 = vmatprep.subr.mxu0 0.0
  %211 = vmatpush1.msra.mxu0 %v186
  %212 = vmatprep.subr.mxu0 0.0
  %213 = vmatpush1.msra.mxu0 %v187
  %214 = vmatprep.subr.mxu0 0.0
  %215 = vmatpush1.msra.mxu0 %v188
  %216 = vmatprep.subr.mxu0 0.0
  %217 = vmatpush1.msra.mxu0 %v189
  %218 = vmatprep.subr.mxu0 0.0
  %219 = vmatpush1.msra.mxu0 %v190
  %220 = vmatprep.subr.mxu0 0.0
  %221 = vmatpush1.msra.mxu0 %v191
  %222 = vmatprep.subr.mxu0 0.0
  %223 = vmatpush1.msra.mxu0 0.0
  %224 = vmatprep.subr.mxu0 0.0
  %225 = vmatpush1.msra.mxu0 0.0
  %226 = vmatprep.subr.mxu0 0.0
  %227 = vmatpush1.msra.mxu0 0.0
  %228 = vmatprep.subr.mxu0 0.0
  %229 = vmatpush1.msra.mxu0 0.0
  %230 = vmatprep.subr.mxu0 0.0
  %231 = vmatpush1.msra.mxu0 0.0
  %232 = vmatprep.subr.mxu0 0.0
  %233 = vmatpush1.msra.mxu0 0.0
  %234 = vmatprep.subr.mxu0 0.0
  %235 = vmatpush1.msra.mxu0 0.0
  %236 = vmatprep.subr.mxu0 0.0
  %237 = vmatpush1.msra.mxu0 0.0
  %238 = vmatprep.subr.mxu0 0.0
  %239 = vmatpush1.msra.mxu0 0.0
  %240 = vmatprep.subr.mxu0 0.0
  %241 = vmatpush1.msra.mxu0 0.0
  %242 = vmatprep.subr.mxu0 0.0
  %243 = vmatpush1.msra.mxu0 0.0
  %244 = vmatprep.subr.mxu0 0.0
  %245 = vmatpush1.msra.mxu0 0.0
  %246 = vmatprep.subr.mxu0 0.0
  %247 = vmatpush1.msra.mxu0 0.0
  %248 = vmatprep.subr.mxu0 0.0
  %249 = vmatpush1.msra.mxu0 0.0
  %250 = vmatprep.subr.mxu0 0.0
  %251 = vmatpush1.msra.mxu0 0.0
  %252 = vmatprep.subr.mxu0 0.0
  %253 = vmatpush1.msra.mxu0 0.0
  %254 = vmatprep.subr.mxu0 0.0
  %255 = vmatpush1.msra.mxu0 0.0
  %256 = vmatprep.subr.mxu0 0.0
  %257 = vmatpush1.msra.mxu0 0.0
  %258 = vmatprep.subr.mxu0 0.0
  %259 = vmatpush1.msra.mxu0 0.0
  %260 = vmatprep.subr.mxu0 0.0
  %261 = vmatpush1.msra.mxu0 0.0
  %262 = vmatprep.subr.mxu0 0.0
  %263 = vmatpush1.msra.mxu0 0.0
  %264 = vmatprep.subr.mxu0 0.0
  %265 = vmatpush1.msra.mxu0 0.0
  %266 = vmatprep.subr.mxu0 0.0
  %267 = vmatpush1.msra.mxu0 0.0
  %268 = vmatprep.subr.mxu0 0.0
  %269 = vmatpush1.msra.mxu0 0.0
  %270 = vmatprep.mubr.f32.mxu0 0.0
  %271 = vmatmul.mubr.f32.gmra.mrb[0].mxu0 %v201
  %v272 = vpop.f32.mrb[0].mxu0
  %v273 = vadd.f32 %v197, %v272
  %v274 = vpop.f32.mrb[0].mxu0
  %275 = vmatprep.mubr.f32.mxu0 0.0
  %276 = vmatmul.mubr.f32.gmra.mrb[0].mxu0 %v204
  %v277 = vpop.f32.mrb[0].mxu0
  %v278 = vadd.f32 %v197, %v277
  %v279 = vpop.f32.mrb[0].mxu0
  %280 = vdwg.mxu0
  %v281 = vadd.f32 %v273, %v26
  %v282 = vadd.f32 %v278, %v27
  %283 = vst.msk [vmem:[%s7] sm:$0xff] %vm28, %v281
  %284 = vst.msk [vmem:[%s7 + $0x8] sm:$0xff] %vm28, %v282
  // Predicated region
  $region30: #{transformer_forward.11} parent=0 // pred_check
    _
  $region31: #{transformer_forward.11} parent=0 // pred_check_branch
    %286 = sbr.rel (0) target = $region33
  $region32: #{transformer_forward.11} parent=0 // pred_region
    _
  $region33: #{transformer_forward.11} parent=0 // pred_fallthru
    _
  // Predicated region
  $region34: #{transformer_forward.11} parent=0 // pred_check
    _
  $region35: #{transformer_forward.11} parent=0 // pred_check_branch
    %288 = sbr.rel (0) target = $region37
  $region36: #{transformer_forward.11} parent=0 // pred_region
    _
  $region37: #{transformer_forward.11} parent=0 // pred_fallthru
    _

// kernel: transformer_forward.15
$region0: #{transformer_forward.15}
  #allocation0 [shape = 'u32[]', space=smem, size = 0x4, offset = 0x4, fixed_abs, tag = 'smem constant byte address 0x4 - core index']
  #allocation1 [shape = 'u32[144,128]{1,0:T(1,128)}', space=vmem, size = 0x12000, scoped, tag = 'internal scratch']
  %s0 = inlined_call_operand.vmem [shape: f32[16,32], index: 0, kind: input, shape index: {}]
  %s1 = inlined_call_operand.vmem [shape: f32[1,32], index: 1, kind: input, shape index: {}]
  %s2 = inlined_call_operand.vmem [shape: f32[1,32], index: 2, kind: input, shape index: {}]
  %s3 = inlined_call_operand.vmem [shape: f32[32,64], index: 3, kind: input, shape index: {}]
  %s4 = inlined_call_operand.vmem [shape: f32[1,64], index: 4, kind: input, shape index: {}]
  %s5 = inlined_call_operand.vmem [shape: f32[64,32], index: 5, kind: input, shape index: {}]
  %s6 = inlined_call_operand.vmem [shape: f32[1,32], index: 6, kind: input, shape index: {}]
  %s7 = inlined_call_operand.hbm [shape: f32[16,32], index: 7, kind: output, shape index: {}]
  %s8 = sld [smem:[#allocation0]]
  $region38: #{transformer_forward.15} parent=0
    _
  %s10 = ssub.s32 1, %s8
  %s11 = scalar_select 0, %s10, %s8
  $region1: #{transformer_forward.15} parent=0
    #allocation2 [shape = 'u8[8192]{0}', space=vmem, size = 0x2000, scoped, tag = 'output window, operand 0, single buffered']
    #allocation3 [shape = 's32[1]{0}', space=sflag, size = 0x4, scoped, tag = 'scoped memory for transformer_forward.15']
    %12 = vsyncpa [#allocation3], 0
    // Predicated region
    $region2: #{transformer_forward.15} parent=1 // pred_check
      _
    $region3: #{transformer_forward.15} parent=1 // pred_check_branch
      %14 = sbr.rel (0) target = $region5
    $region4: #{transformer_forward.15} parent=1 // pred_region
      _
    $region5: #{transformer_forward.15} parent=1 // pred_fallthru
      _
    // Predicated region
    $region6: #{transformer_forward.15} parent=1 // pred_check
      _
    $region7: #{transformer_forward.15} parent=1 // pred_check_branch
      %16 = sbr.rel (0) target = $region9
    $region8: #{transformer_forward.15} parent=1 // pred_region
      _
    $region9: #{transformer_forward.15} parent=1 // pred_fallthru
      _
    // Predicated region
    $region10: #{transformer_forward.15} parent=1 // pred_check
      _
    $region11: #{transformer_forward.15} parent=1 // pred_check_branch
      %18 = sbr.rel (0) target = $region13
    $region12: #{transformer_forward.15} parent=1 // pred_region
      _
    $region13: #{transformer_forward.15} parent=1 // pred_fallthru
      _
    // Predicated region
    $region14: #{transformer_forward.15} parent=1 // pred_check
      _
    $region15: #{transformer_forward.15} parent=1 // pred_check_branch
      %20 = sbr.rel (0) target = $region17
    $region16: #{transformer_forward.15} parent=1 // pred_region
      _
    $region17: #{transformer_forward.15} parent=1 // pred_fallthru
      _
    // Predicated region
    $region18: #{transformer_forward.15} parent=1 // pred_check
      _
    $region19: #{transformer_forward.15} parent=1 // pred_check_branch
      %22 = sbr.rel (0) target = $region21
    $region20: #{transformer_forward.15} parent=1 // pred_region
      _
    $region21: #{transformer_forward.15} parent=1 // pred_fallthru
      _
    // Predicated region
    $region22: #{transformer_forward.15} parent=1 // pred_check
      _
    $region23: #{transformer_forward.15} parent=1 // pred_check_branch
      %24 = sbr.rel (0) target = $region25
    $region24: #{transformer_forward.15} parent=1 // pred_region
      _
    $region25: #{transformer_forward.15} parent=1 // pred_fallthru
      _
    // Predicated region
    $region26: #{transformer_forward.15} parent=1 // pred_check
      _
    $region27: #{transformer_forward.15} parent=1 // pred_check_branch
      %26 = sbr.rel (0) target = $region29
    $region28: #{transformer_forward.15} parent=1 // pred_region
      _
    $region29: #{transformer_forward.15} parent=1 // pred_fallthru
      _
    %v27 = vld [vmem:[%s0] sm:$0xff]
    %v28 = vld [vmem:[%s0 + $0x8] sm:$0xff]
    %vm29 = vcmask 261120
    %v30 = vsel %vm29, %v27, 0.0
    %31 = vadd.xlane.f32.xlu0 %v30
    %v32 = vpop.xlane.xlu0 %31
    %v33 = vsel %vm29, %v28, 0.0
    %34 = vadd.xlane.f32.xlu0 %v33
    %v35 = vpop.xlane.xlu0 %34
    %v36 = vrcp.pop 32.0
    %v37 = vmul.f32 %v32, %v36
    %v38 = vmul.f32 %v35, %v36
    %v39 = vsub.f32 %v27, %v37
    %v40 = vsub.f32 %v28, %v38
    %v41 = vmul.f32 %v39, %v39
    %v42 = vmul.f32 %v40, %v40
    %v43 = vsel %vm29, %v41, 0.0
    %44 = vadd.xlane.f32.xlu0 %v43
    %v45 = vpop.xlane.xlu0 %44
    %v46 = vsel %vm29, %v42, 0.0
    %47 = vadd.xlane.f32.xlu0 %v46
    %v48 = vpop.xlane.xlu0 %47
    %v49 = vmul.f32 %v45, %v36
    %v50 = vmul.f32 %v48, %v36
    %v51 = vadd.f32 %v49, 1e-05
    %v52 = vadd.f32 %v50, 1e-05
    %v53 = vrsqrt.pop %v51
    %v54 = vrsqrt.pop %v52
    %v55 = vmul.f32 %v39, %v53
    %v56 = vmul.f32 %v40, %v54
    %v57 = vld [vmem:[%s1] sm:$0x1]
    %v59 = vlaneseq
    %v60 = vshrl.u32 %v59, 7
    %v61 = vsub.s32 0, %v60
    %v62 = vrot.slane %v57, %v61
    %v64 = vmul.f32 %v55, %v62
    %v65 = vmul.f32 %v56, %v62
    %v66 = vld [vmem:[%s2] sm:$0x1]
    %v68 = vlaneseq
    %v69 = vshrl.u32 %v68, 7
    %v70 = vsub.s32 0, %v69
    %v71 = vrot.slane %v66, %v70
    %v73 = vadd.f32 %v64, %v71
    %v74 = vadd.f32 %v65, %v71
    %v75 = vld [vmem:[%s3] sm:$0xff]
    %v76 = vld [vmem:[%s3 + $0x8] sm:$0xff]
    %v77 = vld [vmem:[%s3 + $0x10] sm:$0xff]
    %v78 = vld [vmem:[%s3 + $0x18] sm:$0xff]
    %v79 = vld [vmem:[%s4] sm:$0x1]
    %v81 = vlaneseq
    %v82 = vshrl.u32 %v81, 7
    %v83 = vsub.s32 0, %v82
    %v84 = vrot.slane %v79, %v83
    %v87 = vsel %vm29, %v73, 0
    %v90 = vsel %vm29, %v74, 0
    %92 = vmatprep.subr.mxu0 0.0
    %93 = vmatpush1.msra.mxu0 %v75
    %94 = vmatprep.subr.mxu0 0.0
    %95 = vmatpush1.msra.mxu0 %v76
    %96 = vmatprep.subr.mxu0 0.0
    %97 = vmatpush1.msra.mxu0 %v77
    %98 = vmatprep.subr.mxu0 0.0
    %99 = vmatpush1.msra.mxu0 %v78
    %100 = vmatprep.subr.mxu0 0.0
    %101 = vmatpush1.msra.mxu0 0.0
    %102 = vmatprep.subr.mxu0 0.0
    %103 = vmatpush1.msra.mxu0 0.0
    %104 = vmatprep.subr.mxu0 0.0
    %105 = vmatpush1.msra.mxu0 0.0
    %106 = vmatprep.subr.mxu0 0.0
    %107 = vmatpush1.msra.mxu0 0.0
    %108 = vmatprep.subr.mxu0 0.0
    %109 = vmatpush1.msra.mxu0 0.0
    %110 = vmatprep.subr.mxu0 0.0
    %111 = vmatpush1.msra.mxu0 0.0
    %112 = vmatprep.subr.mxu0 0.0
    %113 = vmatpush1.msra.mxu0 0.0
    %114 = vmatprep.subr.mxu0 0.0
    %115 = vmatpush1.msra.mxu0 0.0
    %116 = vmatprep.subr.mxu0 0.0
    %117 = vmatpush1.msra.mxu0 0.0
    %118 = vmatprep.subr.mxu0 0.0
    %119 = vmatpush1.msra.mxu0 0.0
    %120 = vmatprep.subr.mxu0 0.0
    %121 = vmatpush1.msra.mxu0 0.0
    %122 = vmatprep.subr.mxu0 0.0
    %123 = vmatpush1.msra.mxu0 0.0
    %124 = vmatprep.subr.mxu0 0.0
    %125 = vmatpush1.msra.mxu0 0.0
    %126 = vmatprep.subr.mxu0 0.0
    %127 = vmatpush1.msra.mxu0 0.0
    %128 = vmatprep.subr.mxu0 0.0
    %129 = vmatpush1.msra.mxu0 0.0
    %130 = vmatprep.subr.mxu0 0.0
    %131 = vmatpush1.msra.mxu0 0.0
    %132 = vmatprep.subr.mxu0 0.0
    %133 = vmatpush1.msra.mxu0 0.0
    %134 = vmatprep.subr.mxu0 0.0
    %135 = vmatpush1.msra.mxu0 0.0
    %136 = vmatprep.subr.mxu0 0.0
    %137 = vmatpush1.msra.mxu0 0.0
    %138 = vmatprep.subr.mxu0 0.0
    %139 = vmatpush1.msra.mxu0 0.0
    %140 = vmatprep.subr.mxu0 0.0
    %141 = vmatpush1.msra.mxu0 0.0
    %142 = vmatprep.subr.mxu0 0.0
    %143 = vmatpush1.msra.mxu0 0.0
    %144 = vmatprep.subr.mxu0 0.0
    %145 = vmatpush1.msra.mxu0 0.0
    %146 = vmatprep.subr.mxu0 0.0
    %147 = vmatpush1.msra.mxu0 0.0
    %148 = vmatprep.subr.mxu0 0.0
    %149 = vmatpush1.msra.mxu0 0.0
    %150 = vmatprep.subr.mxu0 0.0
    %151 = vmatpush1.msra.mxu0 0.0
    %152 = vmatprep.subr.mxu0 0.0
    %153 = vmatpush1.msra.mxu0 0.0
    %154 = vmatprep.subr.mxu0 0.0
    %155 = vmatpush1.msra.mxu0 0.0
    %156 = vmatprep.mubr.f32.mxu0 0.0
    %157 = vmatmul.mubr.f32.gmra.mrb[0].mxu0 %v87
    %v158 = vpop.f32.mrb[0].mxu0
    %v159 = vadd.f32 %v84, %v158
    %v160 = vpop.f32.mrb[0].mxu0
    %161 = vmatprep.mubr.f32.mxu0 0.0
    %162 = vmatmul.mubr.f32.gmra.mrb[0].mxu0 %v90
    %v163 = vpop.f32.mrb[0].mxu0
    %v164 = vadd.f32 %v84, %v163
    %v165 = vpop.f32.mrb[0].mxu0
    %166 = vdwg.mxu0
    %v167 = vmul.f32 %v159, 0.5
    %v168 = vmul.f32 %v164, 0.5
    %v169 = vmul.f32 %v159, 0.044715
    %v170 = vmul.f32 %v164, 0.044715
    %v171 = vmul.f32 %v169, %v159
    %v172 = vmul.f32 %v170, %v164
    %v173 = vmul.f32 %v171, %v159
    %v174 = vmul.f32 %v172, %v164
    %v175 = vadd.f32 %v159, %v173
    %v176 = vadd.f32 %v164, %v174
    %v177 = vmul.f32 %v175, 0.7978846
    %v178 = vmul.f32 %v176, 0.7978846
    %v179 = vtanh.pop %v177
    %v180 = vtanh.pop %v178
    %v181 = vadd.f32 %v179, 1.0
    %v182 = vadd.f32 %v180, 1.0
    %v183 = vmul.f32 %v167, %v181
    %v184 = vmul.f32 %v168, %v182
    %v185 = vld [vmem:[%s5] sm:$0xff]
    %v186 = vld [vmem:[%s5 + $0x8] sm:$0xff]
    %v187 = vld [vmem:[%s5 + $0x10] sm:$0xff]
    %v188 = vld [vmem:[%s5 + $0x18] sm:$0xff]
    %v189 = vld [vmem:[%s5 + $0x20] sm:$0xff]
    %v190 = vld [vmem:[%s5 + $0x28] sm:$0xff]
    %v191 = vld [vmem:[%s5 + $0x30] sm:$0xff]
    %v192 = vld [vmem:[%s5 + $0x38] sm:$0xff]
    %v193 = vld [vmem:[%s6] sm:$0x1]
    %v195 = vlaneseq
    %v196 = vshrl.u32 %v195, 7
    %v197 = vsub.s32 0, %v196
    %v198 = vrot.slane %v193, %v197
    %vm200 = vcmask 523264
    %v202 = vsel %vm200, %v183, 0
    %v205 = vsel %vm200, %v184, 0
    %207 = vmatprep.subr.mxu0 0.0
    %208 = vmatpush1.msra.mxu0 %v185
    %209 = vmatprep.subr.mxu0 0.0
    %210 = vmatpush1.msra.mxu0 %v186
    %211 = vmatprep.subr.mxu0 0.0
    %212 = vmatpush1.msra.mxu0 %v187
    %213 = vmatprep.subr.mxu0 0.0
    %214 = vmatpush1.msra.mxu0 %v188
    %215 = vmatprep.subr.mxu0 0.0
    %216 = vmatpush1.msra.mxu0 %v189
    %217 = vmatprep.subr.mxu0 0.0
    %218 = vmatpush1.msra.mxu0 %v190
    %219 = vmatprep.subr.mxu0 0.0
    %220 = vmatpush1.msra.mxu0 %v191
    %221 = vmatprep.subr.mxu0 0.0
    %222 = vmatpush1.msra.mxu0 %v192
    %223 = vmatprep.subr.mxu0 0.0
    %224 = vmatpush1.msra.mxu0 0.0
    %225 = vmatprep.subr.mxu0 0.0
    %226 = vmatpush1.msra.mxu0 0.0
    %227 = vmatprep.subr.mxu0 0.0
    %228 = vmatpush1.msra.mxu0 0.0
    %229 = vmatprep.subr.mxu0 0.0
    %230 = vmatpush1.msra.mxu0 0.0
    %231 = vmatprep.subr.mxu0 0.0
    %232 = vmatpush1.msra.mxu0 0.0
    %233 = vmatprep.subr.mxu0 0.0
    %234 = vmatpush1.msra.mxu0 0.0
    %235 = vmatprep.subr.mxu0 0.0
    %236 = vmatpush1.msra.mxu0 0.0
    %237 = vmatprep.subr.mxu0 0.0
    %238 = vmatpush1.msra.mxu0 0.0
    %239 = vmatprep.subr.mxu0 0.0
    %240 = vmatpush1.msra.mxu0 0.0
    %241 = vmatprep.subr.mxu0 0.0
    %242 = vmatpush1.msra.mxu0 0.0
    %243 = vmatprep.subr.mxu0 0.0
    %244 = vmatpush1.msra.mxu0 0.0
    %245 = vmatprep.subr.mxu0 0.0
    %246 = vmatpush1.msra.mxu0 0.0
    %247 = vmatprep.subr.mxu0 0.0
    %248 = vmatpush1.msra.mxu0 0.0
    %249 = vmatprep.subr.mxu0 0.0
    %250 = vmatpush1.msra.mxu0 0.0
    %251 = vmatprep.subr.mxu0 0.0
    %252 = vmatpush1.msra.mxu0 0.0
    %253 = vmatprep.subr.mxu0 0.0
    %254 = vmatpush1.msra.mxu0 0.0
    %255 = vmatprep.subr.mxu0 0.0
    %256 = vmatpush1.msra.mxu0 0.0
    %257 = vmatprep.subr.mxu0 0.0
    %258 = vmatpush1.msra.mxu0 0.0
    %259 = vmatprep.subr.mxu0 0.0
    %260 = vmatpush1.msra.mxu0 0.0
    %261 = vmatprep.subr.mxu0 0.0
    %262 = vmatpush1.msra.mxu0 0.0
    %263 = vmatprep.subr.mxu0 0.0
    %264 = vmatpush1.msra.mxu0 0.0
    %265 = vmatprep.subr.mxu0 0.0
    %266 = vmatpush1.msra.mxu0 0.0
    %267 = vmatprep.subr.mxu0 0.0
    %268 = vmatpush1.msra.mxu0 0.0
    %269 = vmatprep.subr.mxu0 0.0
    %270 = vmatpush1.msra.mxu0 0.0
    %271 = vmatprep.mubr.f32.mxu0 0.0
    %272 = vmatmul.mubr.f32.gmra.mrb[0].mxu0 %v202
    %v273 = vpop.f32.mrb[0].mxu0
    %v274 = vadd.f32 %v198, %v273
    %v275 = vpop.f32.mrb[0].mxu0
    %276 = vmatprep.mubr.f32.mxu0 0.0
    %277 = vmatmul.mubr.f32.gmra.mrb[0].mxu0 %v205
    %v278 = vpop.f32.mrb[0].mxu0
    %v279 = vadd.f32 %v198, %v278
    %v280 = vpop.f32.mrb[0].mxu0
    %281 = vdwg.mxu0
    %v282 = vadd.f32 %v274, %v27
    %v283 = vadd.f32 %v279, %v28
    %284 = vst.msk [vmem:[#allocation2] sm:$0xff] %vm29, %v282
    %285 = vst.msk [vmem:[#allocation2 + $0x8] sm:$0xff] %vm29, %v283
    // Predicated region
    $region30: #{transformer_forward.15} parent=1 // pred_check
      _
    $region31: #{transformer_forward.15} parent=1 // pred_check_branch
      %287 = sbr.rel (0) target = $region33
    $region32: #{transformer_forward.15} parent=1 // pred_region
      %s289 = ssub.s32 256, 256
      %290 = vsyncadd [#allocation3], %s289
      %s291 = sshll.u32 [#allocation2], 4
      %s292 = int_to_ptr.vmem [resolvable:$true] %s291
      %297 = dma.vmem_to_hbm [thread:$0]  %s292, 256, %s7, [#allocation3], 128, 128, 8
    $region33: #{transformer_forward.15} parent=1 // pred_fallthru
      _
    // Predicated region
    $region34: #{transformer_forward.15} parent=1 // pred_check
      _
    $region35: #{transformer_forward.15} parent=1 // pred_check_branch
      %299 = sbr.rel (0) target = $region37
    $region36: #{transformer_forward.15} parent=1 // pred_region
      %300 = dma.done [#allocation3], 256
    $region37: #{transformer_forward.15} parent=1 // pred_fallthru
      _
    %301 = vsyncpa [#allocation3], 1

</llo_original>
